<compile_context>
chip_gen: v7x
topology: tpu7x:2x2x1
jax: 0.10.0
libtpu: 0.0.40
codegen_flags: <defaults>
</compile_context>

<pallas_src>
import jax
import jax.numpy as jnp
from jax.experimental import pallas as pl
from jax.experimental.pallas import tpu as pltpu

HIGH = jax.lax.Precision.HIGHEST


# ----------------------------------------------------------------------------
# Single fused kernel: embedding gather + both LSTMs + fc/tanh head.
# ----------------------------------------------------------------------------
def encoder_fused_kernel(pre_ids_ref, post_ids_ref, table_ref, bias_ref,
                         whh_ref, fcw_ref, fcb_ref,
                         out_ref, hid_ref, cell_ref):
    L2, B, H = out_ref.shape
    L = L2 // 2
    LB = L * B
    V2 = table_ref.shape[0]          # 2 * vocab (pre rows, then post rows)
    V = V2 // 2
    H2, H6 = 2 * H, 6 * H

    # ---- Embedding lookup + input projection, fused into ONE MXU matmul ----
    # table rows 0:V hold emb @ W_ih_pre^T (placed in the pre gate columns,
    # zeros elsewhere); rows V:2V hold the post-direction equivalent.  A
    # (LB, 2V) one-hot over both token streams therefore produces every
    # timestep's input gates for both directions in a single matmul.
    iota = jax.lax.broadcasted_iota(jnp.int32, (LB, V2), 1)
    target = jnp.where(iota < V, pre_ids_ref[...], post_ids_ref[...] + V)
    onehot = (iota == target).astype(jnp.float32)                   # (LB, 2V)
    gx = jnp.dot(onehot, table_ref[...],
                 preferred_element_type=jnp.float32) + bias_ref[...]  # (LB, 8H)

    whh = whh_ref[...]               # (2H, 8H) block-diagonal, loaded once

    # Pre-slice the per-step input gates; they do not depend on the recurrence
    # carries, so these sub-tile reads stay off the serial critical path.
    gx_t = [gx[t * B:(t + 1) * B, :] for t in range(L)]

    h = jnp.zeros((B, H2), jnp.float32)    # [h_pre | h_post]
    c = jnp.zeros((B, H2), jnp.float32)    # [c_pre | c_post]
    for t in range(L):                     # L=8 -> fully unrolled at trace time
        # One matmul covers both directions (block-diagonal W_hh).
        gates = gx_t[t] + jnp.dot(h, whh, preferred_element_type=jnp.float32)
        # Fused gate lane layout: [i|i, f|f, o|o, g|g] (pre|post per block),
        # so the activations are one sigmoid pass + one tanh pass.
        sig = jax.nn.sigmoid(gates[:, :H6])
        g_g = jnp.tanh(gates[:, H6:])
        i_g = sig[:, 0:H2]
        f_g = sig[:, H2:2 * H2]
        o_g = sig[:, 2 * H2:H6]
        c = f_g * c + i_g * g_g
        h = o_g * jnp.tanh(c)
        out_ref[t] = h[:, :H]          # pre-encoder output at time t
        out_ref[L + t] = h[:, H:]      # post-encoder output at time L + t

    # ---- fc + tanh head on the final (h, c), fused into the same kernel ----
    fcw = fcw_ref[...]                 # (2H, dec), pre-transposed
    fcb = fcb_ref[...]                 # (1, dec)
    hid_ref[...] = jnp.tanh(
        jnp.dot(h, fcw, preferred_element_type=jnp.float32) + fcb)
    cell_ref[...] = jnp.tanh(
        jnp.dot(c, fcw, preferred_element_type=jnp.float32) + fcb)


def encoder_fused_pallas(pre_ids, post_ids, table, bias, whh, fcw, fcb,
                         L, B, H, dec):
    """All operands are tiny; keep everything resident in VMEM, no grid."""
    vmem = pl.BlockSpec(memory_space=pltpu.MemorySpace.VMEM)
    return pl.pallas_call(
        encoder_fused_kernel,
        out_shape=(
            jax.ShapeDtypeStruct((2 * L, B, H), jnp.float32),
            jax.ShapeDtypeStruct((B, dec), jnp.float32),
            jax.ShapeDtypeStruct((B, dec), jnp.float32),
        ),
        in_specs=[vmem] * 7,
        out_specs=(vmem, vmem, vmem),
    )(pre_ids, post_ids, table, bias, whh, fcw, fcb)


# ----------------------------------------------------------------------------
# One-time parameter preparation (hoisted out of the per-call forward).
# ----------------------------------------------------------------------------
def prepare_params(params):
    """Builds the fused, pre-transposed weights used by the kernel.

    Fused gate column layout (8H lanes): [i_pre, i_post, f_pre, f_post,
    o_pre, o_post, g_pre, g_post].  PyTorch LSTM row order is (i, f, g, o).
    """
    emb = params["embedding"]                      # (V, E)
    V = emb.shape[0]
    H = params["pre_whh"].shape[1]

    def col_blocks(m):                             # (R, 4H) -> i, f, g, o blocks
        return (m[:, 0:H], m[:, H:2 * H], m[:, 2 * H:3 * H], m[:, 3 * H:4 * H])

    # Embedding folded into the input projection: per-token gate tables.
    tp = jnp.dot(emb, params["pre_wih"].T, precision=HIGH)    # (V, 4H)
    tq = jnp.dot(emb, params["post_wih"].T, precision=HIGH)   # (V, 4H)
    tp_i, tp_f, tp_g, tp_o = col_blocks(tp)
    tq_i, tq_f, tq_g, tq_o = col_blocks(tq)
    ZV = jnp.zeros((V, H), jnp.float32)
    table = jnp.concatenate([
        jnp.concatenate([tp_i, ZV, tp_f, ZV, tp_o, ZV, tp_g, ZV], axis=1),
        jnp.concatenate([ZV, tq_i, ZV, tq_f, ZV, tq_o, ZV, tq_g], axis=1),
    ], axis=0)                                                 # (2V, 8H)

    bp_i, bp_f, bp_g, bp_o = col_blocks(params["pre_b"])       # (1, H) each
    bq_i, bq_f, bq_g, bq_o = col_blocks(params["post_b"])
    bias = jnp.concatenate(
        [bp_i, bq_i, bp_f, bq_f, bp_o, bq_o, bp_g, bq_g], axis=1)  # (1, 8H)

    # Block-diagonal recurrent weights: rows 0:H act on h_pre, rows H:2H on h_post.
    wp_i, wp_f, wp_g, wp_o = col_blocks(params["pre_whh"].T)   # (H, H) each
    wq_i, wq_f, wq_g, wq_o = col_blocks(params["post_whh"].T)
    ZH = jnp.zeros((H, H), jnp.float32)
    whh = jnp.concatenate([
        jnp.concatenate([wp_i, ZH, wp_f, ZH, wp_o, ZH, wp_g, ZH], axis=1),
        jnp.concatenate([ZH, wq_i, ZH, wq_f, ZH, wq_o, ZH, wq_g], axis=1),
    ], axis=0)                                                 # (2H, 8H)

    return {
        "table": table,
        "bias": bias,
        "whh": whh,
        "fcw": params["fc_w"].T,                               # (2H, dec)
        "fcb": params["fc_b"].reshape(1, -1),                  # (1, dec)
    }


# ----------------------------------------------------------------------------
# Encoder forward: only two free reshapes of the token ids, then one kernel.
# ----------------------------------------------------------------------------
def encoder_forward(prep, prefix, postfix):
    L, B = prefix.shape
    H = prep["whh"].shape[0] // 2
    dec = prep["fcw"].shape[1]
    pre_ids = prefix.reshape(L * B, 1).astype(jnp.int32)
    post_ids = postfix.reshape(L * B, 1).astype(jnp.int32)
    out, hid, cell = encoder_fused_pallas(
        pre_ids, post_ids, prep["table"], prep["bias"], prep["whh"],
        prep["fcw"], prep["fcb"], L, B, H, dec)
    return out, (hid, cell)


# ----------------------------------------------------------------------------
# Pure-JAX reference (for correctness check).
# ----------------------------------------------------------------------------
def lstm_ref(x, w_ih, w_hh, b):
    L, B, E = x.shape
    H = w_hh.shape[1]

    def step(carry, xt):
        h, c = carry
        gates = (jnp.dot(xt, w_ih.T, precision=HIGH)
                 + jnp.dot(h, w_hh.T, precision=HIGH) + b[0])
        i, f, g, o = jnp.split(gates, 4, axis=-1)
        c = jax.nn.sigmoid(f) * c + jax.nn.sigmoid(i) * jnp.tanh(g)
        h = jax.nn.sigmoid(o) * jnp.tanh(c)
        return (h, c), h

    init = (jnp.zeros((B, H), jnp.float32), jnp.zeros((B, H), jnp.float32))
    (h, c), outs = jax.lax.scan(step, init, x)
    return outs, h, c


def encoder_forward_ref(params, prefix, postfix):
    emb = params["embedding"]
    pre_out, pre_h, pre_c = lstm_ref(
        emb[prefix], params["pre_wih"], params["pre_whh"], params["pre_b"])
    post_out, post_h, post_c = lstm_ref(
        emb[postfix], params["post_wih"], params["post_whh"], params["post_b"])
    stacked_out = jnp.concatenate([pre_out, post_out], axis=0)
    h_cat = jnp.concatenate([pre_h, post_h], axis=-1)
    c_cat = jnp.concatenate([pre_c, post_c], axis=-1)
    fcw, fcb = params["fc_w"], params["fc_b"]
    stacked_hidden = jnp.tanh(jnp.dot(h_cat, fcw.T, precision=HIGH) + fcb)
    stacked_cell = jnp.tanh(jnp.dot(c_cat, fcw.T, precision=HIGH) + fcb)
    return stacked_out, (stacked_hidden, stacked_cell)


# ----------------------------------------------------------------------------
# Deterministic parameter init (PyTorch-style uniform(-1/sqrt(H), 1/sqrt(H))).
# ----------------------------------------------------------------------------
def init_params(key, vocab, input_size, enc_hid, dec_hid):
    ks = jax.random.split(key, 12)
    kH = 1.0 / jnp.sqrt(enc_hid)
    kD = 1.0 / jnp.sqrt(2 * enc_hid)

    def u(k, shape, bound):
        return jax.random.uniform(k, shape, jnp.float32, -bound, bound)

    params = {
        "embedding": jax.random.normal(ks[0], (vocab, input_size), jnp.float32) * 0.1,
        "pre_wih": u(ks[1], (4 * enc_hid, input_size), kH),
        "pre_whh": u(ks[2], (4 * enc_hid, enc_hid), kH),
        "pre_b": (u(ks[3], (1, 4 * enc_hid), kH) + u(ks[4], (1, 4 * enc_hid), kH)),
        "post_wih": u(ks[5], (4 * enc_hid, input_size), kH),
        "post_whh": u(ks[6], (4 * enc_hid, enc_hid), kH),
        "post_b": (u(ks[7], (1, 4 * enc_hid), kH) + u(ks[8], (1, 4 * enc_hid), kH)),
        "fc_w": u(ks[9], (dec_hid, 2 * enc_hid), kD),
        "fc_b": u(ks[10], (dec_hid,), kD),
    }
    return params


if __name__ == "__main__":
    # Small shapes: seq_len=8, batch=2, embed/input_size=16, enc_hid=32, dec_hid=32.
    L, B, VOCAB, E, H, DEC = 8, 2, 20, 16, 32, 32

    key = jax.random.PRNGKey(0)
    k_params, k_pre, k_post = jax.random.split(key, 3)
    params = init_params(k_params, VOCAB, E, H, DEC)

    prefix = jax.random.randint(k_pre, (L, B), 0, VOCAB, dtype=jnp.int32)
    postfix = jax.random.randint(k_post, (L, B), 0, VOCAB, dtype=jnp.int32)

    # One-time parameter preparation (weight fusion / transposes done once,
    # NOT per forward call).
    prep = prepare_params(params)
    prep = jax.block_until_ready(prep)

    fwd = jax.jit(encoder_forward)
    out, (hid, cell) = fwd(prep, prefix, postfix)
    out, hid, cell = jax.block_until_ready((out, hid, cell))

    # Correctness check against the pure-JAX reference.
    out_r, (hid_r, cell_r) = encoder_forward_ref(params, prefix, postfix)
    assert out.shape == (2 * L, B, H)
    assert hid.shape == (B, DEC) and cell.shape == (B, DEC)
    assert jnp.allclose(out, out_r, atol=1e-4, rtol=1e-4)
    assert jnp.allclose(hid, hid_r, atol=1e-4, rtol=1e-4)
    assert jnp.allclose(cell, cell_r, atol=1e-4, rtol=1e-4)

    print("KERNEL_OK")
</pallas_src>

<mosaic_0001>
module attributes {stable_mosaic.version = 11 : i64} {
  func.func @encoder_fused_kernel(%arg0: memref<16x1xi32, #tpu.memory_space<vmem>>, %arg1: memref<16x1xi32, #tpu.memory_space<vmem>>, %arg2: memref<40x256xf32, #tpu.memory_space<vmem>>, %arg3: memref<1x256xf32, #tpu.memory_space<vmem>>, %arg4: memref<64x256xf32, #tpu.memory_space<vmem>>, %arg5: memref<64x32xf32, #tpu.memory_space<vmem>>, %arg6: memref<1x32xf32, #tpu.memory_space<vmem>>, %arg7: memref<16x2x32xf32, #tpu.memory_space<vmem>>, %arg8: memref<2x32xf32, #tpu.memory_space<vmem>>, %arg9: memref<2x32xf32, #tpu.memory_space<vmem>>) attributes {dimension_semantics = [], scalar_prefetch = 0 : i64, scratch_operands = 0 : i64, tpu.core_type = #tpu.core_type<tc>} {
    %0 = tpu.iota {dimensions = array<i32: 1>} : vector<16x40xi32>
    %c20_i32 = arith.constant 20 : i32
    %1 = vector.broadcast %c20_i32 : i32 to vector<16x40xi32>
    %2 = arith.cmpi slt, %0, %1 : vector<16x40xi32>
    %c0 = arith.constant 0 : index
    %c0_0 = arith.constant 0 : index
    %3 = vector.load %arg0[%c0, %c0_0] : memref<16x1xi32, #tpu.memory_space<vmem>>, vector<16x1xi32>
    %c0_1 = arith.constant 0 : index
    %c0_2 = arith.constant 0 : index
    %4 = vector.load %arg1[%c0_1, %c0_2] : memref<16x1xi32, #tpu.memory_space<vmem>>, vector<16x1xi32>
    %c20_i32_3 = arith.constant 20 : i32
    %5 = vector.broadcast %c20_i32_3 : i32 to vector<16x1xi32>
    %6 = arith.addi %4, %5 : vector<16x1xi32>
    %7 = vector.shape_cast %3 : vector<16x1xi32> to vector<16x1xi32>
    %8 = vector.broadcast %7 : vector<16x1xi32> to vector<16x40xi32>
    %9 = vector.shape_cast %6 : vector<16x1xi32> to vector<16x1xi32>
    %10 = vector.broadcast %9 : vector<16x1xi32> to vector<16x40xi32>
    %11 = arith.select %2, %8, %10 : vector<16x40xi1>, vector<16x40xi32>
    %12 = arith.cmpi eq, %0, %11 : vector<16x40xi32>
    %13 = arith.extui %12 : vector<16x40xi1> to vector<16x40xi32>
    %14 = arith.sitofp %13 : vector<16x40xi32> to vector<16x40xf32>
    %c0_4 = arith.constant 0 : index
    %c0_5 = arith.constant 0 : index
    %15 = vector.load %arg2[%c0_4, %c0_5] : memref<40x256xf32, #tpu.memory_space<vmem>>, vector<40x256xf32>
    %cst = arith.constant dense<0.000000e+00> : vector<16x256xf32>
    %16 = tpu.matmul %14, %15, %cst {dimension_numbers = #tpu.dot_dimension_numbers<[1], [0], [0], [1], [0, 0, 1, 1], [], []>} : vector<16x40xf32>, vector<40x256xf32>, vector<16x256xf32> -> vector<16x256xf32>
    %c0_6 = arith.constant 0 : index
    %c0_7 = arith.constant 0 : index
    %17 = vector.load %arg3[%c0_6, %c0_7] : memref<1x256xf32, #tpu.memory_space<vmem>>, vector<1x256xf32>
    %18 = vector.broadcast %17 : vector<1x256xf32> to vector<16x256xf32>
    %19 = arith.addf %16, %18 : vector<16x256xf32>
    %c0_8 = arith.constant 0 : index
    %c0_9 = arith.constant 0 : index
    %20 = vector.load %arg4[%c0_8, %c0_9] : memref<64x256xf32, #tpu.memory_space<vmem>>, vector<64x256xf32>
    %21 = vector.extract_strided_slice %19 {offsets = [0, 0], sizes = [2, 256], strides = [1, 1]} : vector<16x256xf32> to vector<2x256xf32>
    %22 = vector.extract_strided_slice %19 {offsets = [2, 0], sizes = [2, 256], strides = [1, 1]} : vector<16x256xf32> to vector<2x256xf32>
    %23 = vector.extract_strided_slice %19 {offsets = [4, 0], sizes = [2, 256], strides = [1, 1]} : vector<16x256xf32> to vector<2x256xf32>
    %24 = vector.extract_strided_slice %19 {offsets = [6, 0], sizes = [2, 256], strides = [1, 1]} : vector<16x256xf32> to vector<2x256xf32>
    %25 = vector.extract_strided_slice %19 {offsets = [8, 0], sizes = [2, 256], strides = [1, 1]} : vector<16x256xf32> to vector<2x256xf32>
    %26 = vector.extract_strided_slice %19 {offsets = [10, 0], sizes = [2, 256], strides = [1, 1]} : vector<16x256xf32> to vector<2x256xf32>
    %27 = vector.extract_strided_slice %19 {offsets = [12, 0], sizes = [2, 256], strides = [1, 1]} : vector<16x256xf32> to vector<2x256xf32>
    %28 = vector.extract_strided_slice %19 {offsets = [14, 0], sizes = [2, 256], strides = [1, 1]} : vector<16x256xf32> to vector<2x256xf32>
    %cst_10 = arith.constant 0.000000e+00 : f32
    %29 = vector.broadcast %cst_10 : f32 to vector<2x64xf32>
    %cst_11 = arith.constant 0.000000e+00 : f32
    %30 = vector.broadcast %cst_11 : f32 to vector<2x64xf32>
    %cst_12 = arith.constant dense<0.000000e+00> : vector<2x256xf32>
    %31 = tpu.matmul %29, %20, %cst_12 {dimension_numbers = #tpu.dot_dimension_numbers<[1], [0], [0], [1], [0, 0, 1, 1], [], []>} : vector<2x64xf32>, vector<64x256xf32>, vector<2x256xf32> -> vector<2x256xf32>
    %32 = arith.addf %21, %31 : vector<2x256xf32>
    %33 = vector.extract_strided_slice %32 {offsets = [0, 0], sizes = [2, 192], strides = [1, 1]} : vector<2x256xf32> to vector<2x192xf32>
    %34 = arith.negf %33 : vector<2x192xf32>
    %35 = math.exp %34 : vector<2x192xf32>
    %cst_13 = arith.constant 1.000000e+00 : f32
    %36 = vector.broadcast %cst_13 : f32 to vector<2x192xf32>
    %37 = arith.addf %36, %35 : vector<2x192xf32>
    %38 = arith.divf %36, %37 : vector<2x192xf32>
    %39 = vector.extract_strided_slice %32 {offsets = [0, 192], sizes = [2, 64], strides = [1, 1]} : vector<2x256xf32> to vector<2x64xf32>
    %40 = math.tanh %39 : vector<2x64xf32>
    %41 = vector.extract_strided_slice %38 {offsets = [0, 0], sizes = [2, 64], strides = [1, 1]} : vector<2x192xf32> to vector<2x64xf32>
    %42 = vector.extract_strided_slice %38 {offsets = [0, 64], sizes = [2, 64], strides = [1, 1]} : vector<2x192xf32> to vector<2x64xf32>
    %43 = vector.extract_strided_slice %38 {offsets = [0, 128], sizes = [2, 64], strides = [1, 1]} : vector<2x192xf32> to vector<2x64xf32>
    %44 = arith.mulf %42, %30 : vector<2x64xf32>
    %45 = arith.mulf %41, %40 : vector<2x64xf32>
    %46 = arith.addf %44, %45 : vector<2x64xf32>
    %47 = math.tanh %46 : vector<2x64xf32>
    %48 = arith.mulf %43, %47 : vector<2x64xf32>
    %49 = vector.extract_strided_slice %48 {offsets = [0, 0], sizes = [2, 32], strides = [1, 1]} : vector<2x64xf32> to vector<2x32xf32>
    %c0_14 = arith.constant 0 : index
    %c0_15 = arith.constant 0 : index
    %c0_16 = arith.constant 0 : index
    %50 = vector.load %arg7[%c0_14, %c0_15, %c0_16] : memref<16x2x32xf32, #tpu.memory_space<vmem>>, vector<1x2x32xf32>
    %51 = vector.shape_cast %50 : vector<1x2x32xf32> to vector<2x32xf32>
    %52 = vector.shape_cast %49 : vector<2x32xf32> to vector<1x2x32xf32>
    tpu.vector_store %arg7[%c0_14, %c0_15, %c0_16], %52 {strides = array<i32>} : memref<16x2x32xf32, #tpu.memory_space<vmem>>, vector<1x2x32xf32>,
    %53 = vector.extract_strided_slice %48 {offsets = [0, 32], sizes = [2, 32], strides = [1, 1]} : vector<2x64xf32> to vector<2x32xf32>
    %c8 = arith.constant 8 : index
    %c0_17 = arith.constant 0 : index
    %c0_18 = arith.constant 0 : index
    %54 = vector.load %arg7[%c8, %c0_17, %c0_18] : memref<16x2x32xf32, #tpu.memory_space<vmem>>, vector<1x2x32xf32>
    %55 = vector.shape_cast %54 : vector<1x2x32xf32> to vector<2x32xf32>
    %56 = vector.shape_cast %53 : vector<2x32xf32> to vector<1x2x32xf32>
    tpu.vector_store %arg7[%c8, %c0_17, %c0_18], %56 {strides = array<i32>} : memref<16x2x32xf32, #tpu.memory_space<vmem>>, vector<1x2x32xf32>,
    %cst_19 = arith.constant dense<0.000000e+00> : vector<2x256xf32>
    %57 = tpu.matmul %48, %20, %cst_19 {dimension_numbers = #tpu.dot_dimension_numbers<[1], [0], [0], [1], [0, 0, 1, 1], [], []>} : vector<2x64xf32>, vector<64x256xf32>, vector<2x256xf32> -> vector<2x256xf32>
    %58 = arith.addf %22, %57 : vector<2x256xf32>
    %59 = vector.extract_strided_slice %58 {offsets = [0, 0], sizes = [2, 192], strides = [1, 1]} : vector<2x256xf32> to vector<2x192xf32>
    %60 = arith.negf %59 : vector<2x192xf32>
    %61 = math.exp %60 : vector<2x192xf32>
    %cst_20 = arith.constant 1.000000e+00 : f32
    %62 = vector.broadcast %cst_20 : f32 to vector<2x192xf32>
    %63 = arith.addf %62, %61 : vector<2x192xf32>
    %64 = arith.divf %62, %63 : vector<2x192xf32>
    %65 = vector.extract_strided_slice %58 {offsets = [0, 192], sizes = [2, 64], strides = [1, 1]} : vector<2x256xf32> to vector<2x64xf32>
    %66 = math.tanh %65 : vector<2x64xf32>
    %67 = vector.extract_strided_slice %64 {offsets = [0, 0], sizes = [2, 64], strides = [1, 1]} : vector<2x192xf32> to vector<2x64xf32>
    %68 = vector.extract_strided_slice %64 {offsets = [0, 64], sizes = [2, 64], strides = [1, 1]} : vector<2x192xf32> to vector<2x64xf32>
    %69 = vector.extract_strided_slice %64 {offsets = [0, 128], sizes = [2, 64], strides = [1, 1]} : vector<2x192xf32> to vector<2x64xf32>
    %70 = arith.mulf %68, %46 : vector<2x64xf32>
    %71 = arith.mulf %67, %66 : vector<2x64xf32>
    %72 = arith.addf %70, %71 : vector<2x64xf32>
    %73 = math.tanh %72 : vector<2x64xf32>
    %74 = arith.mulf %69, %73 : vector<2x64xf32>
    %75 = vector.extract_strided_slice %74 {offsets = [0, 0], sizes = [2, 32], strides = [1, 1]} : vector<2x64xf32> to vector<2x32xf32>
    %c1 = arith.constant 1 : index
    %c0_21 = arith.constant 0 : index
    %c0_22 = arith.constant 0 : index
    %76 = vector.load %arg7[%c1, %c0_21, %c0_22] : memref<16x2x32xf32, #tpu.memory_space<vmem>>, vector<1x2x32xf32>
    %77 = vector.shape_cast %76 : vector<1x2x32xf32> to vector<2x32xf32>
    %78 = vector.shape_cast %75 : vector<2x32xf32> to vector<1x2x32xf32>
    tpu.vector_store %arg7[%c1, %c0_21, %c0_22], %78 {strides = array<i32>} : memref<16x2x32xf32, #tpu.memory_space<vmem>>, vector<1x2x32xf32>,
    %79 = vector.extract_strided_slice %74 {offsets = [0, 32], sizes = [2, 32], strides = [1, 1]} : vector<2x64xf32> to vector<2x32xf32>
    %c9 = arith.constant 9 : index
    %c0_23 = arith.constant 0 : index
    %c0_24 = arith.constant 0 : index
    %80 = vector.load %arg7[%c9, %c0_23, %c0_24] : memref<16x2x32xf32, #tpu.memory_space<vmem>>, vector<1x2x32xf32>
    %81 = vector.shape_cast %80 : vector<1x2x32xf32> to vector<2x32xf32>
    %82 = vector.shape_cast %79 : vector<2x32xf32> to vector<1x2x32xf32>
    tpu.vector_store %arg7[%c9, %c0_23, %c0_24], %82 {strides = array<i32>} : memref<16x2x32xf32, #tpu.memory_space<vmem>>, vector<1x2x32xf32>,
    %cst_25 = arith.constant dense<0.000000e+00> : vector<2x256xf32>
    %83 = tpu.matmul %74, %20, %cst_25 {dimension_numbers = #tpu.dot_dimension_numbers<[1], [0], [0], [1], [0, 0, 1, 1], [], []>} : vector<2x64xf32>, vector<64x256xf32>, vector<2x256xf32> -> vector<2x256xf32>
    %84 = arith.addf %23, %83 : vector<2x256xf32>
    %85 = vector.extract_strided_slice %84 {offsets = [0, 0], sizes = [2, 192], strides = [1, 1]} : vector<2x256xf32> to vector<2x192xf32>
    %86 = arith.negf %85 : vector<2x192xf32>
    %87 = math.exp %86 : vector<2x192xf32>
    %cst_26 = arith.constant 1.000000e+00 : f32
    %88 = vector.broadcast %cst_26 : f32 to vector<2x192xf32>
    %89 = arith.addf %88, %87 : vector<2x192xf32>
    %90 = arith.divf %88, %89 : vector<2x192xf32>
    %91 = vector.extract_strided_slice %84 {offsets = [0, 192], sizes = [2, 64], strides = [1, 1]} : vector<2x256xf32> to vector<2x64xf32>
    %92 = math.tanh %91 : vector<2x64xf32>
    %93 = vector.extract_strided_slice %90 {offsets = [0, 0], sizes = [2, 64], strides = [1, 1]} : vector<2x192xf32> to vector<2x64xf32>
    %94 = vector.extract_strided_slice %90 {offsets = [0, 64], sizes = [2, 64], strides = [1, 1]} : vector<2x192xf32> to vector<2x64xf32>
    %95 = vector.extract_strided_slice %90 {offsets = [0, 128], sizes = [2, 64], strides = [1, 1]} : vector<2x192xf32> to vector<2x64xf32>
    %96 = arith.mulf %94, %72 : vector<2x64xf32>
    %97 = arith.mulf %93, %92 : vector<2x64xf32>
    %98 = arith.addf %96, %97 : vector<2x64xf32>
    %99 = math.tanh %98 : vector<2x64xf32>
    %100 = arith.mulf %95, %99 : vector<2x64xf32>
    %101 = vector.extract_strided_slice %100 {offsets = [0, 0], sizes = [2, 32], strides = [1, 1]} : vector<2x64xf32> to vector<2x32xf32>
    %c2 = arith.constant 2 : index
    %c0_27 = arith.constant 0 : index
    %c0_28 = arith.constant 0 : index
    %102 = vector.load %arg7[%c2, %c0_27, %c0_28] : memref<16x2x32xf32, #tpu.memory_space<vmem>>, vector<1x2x32xf32>
    %103 = vector.shape_cast %102 : vector<1x2x32xf32> to vector<2x32xf32>
    %104 = vector.shape_cast %101 : vector<2x32xf32> to vector<1x2x32xf32>
    tpu.vector_store %arg7[%c2, %c0_27, %c0_28], %104 {strides = array<i32>} : memref<16x2x32xf32, #tpu.memory_space<vmem>>, vector<1x2x32xf32>,
    %105 = vector.extract_strided_slice %100 {offsets = [0, 32], sizes = [2, 32], strides = [1, 1]} : vector<2x64xf32> to vector<2x32xf32>
    %c10 = arith.constant 10 : index
    %c0_29 = arith.constant 0 : index
    %c0_30 = arith.constant 0 : index
    %106 = vector.load %arg7[%c10, %c0_29, %c0_30] : memref<16x2x32xf32, #tpu.memory_space<vmem>>, vector<1x2x32xf32>
    %107 = vector.shape_cast %106 : vector<1x2x32xf32> to vector<2x32xf32>
    %108 = vector.shape_cast %105 : vector<2x32xf32> to vector<1x2x32xf32>
    tpu.vector_store %arg7[%c10, %c0_29, %c0_30], %108 {strides = array<i32>} : memref<16x2x32xf32, #tpu.memory_space<vmem>>, vector<1x2x32xf32>,
    %cst_31 = arith.constant dense<0.000000e+00> : vector<2x256xf32>
    %109 = tpu.matmul %100, %20, %cst_31 {dimension_numbers = #tpu.dot_dimension_numbers<[1], [0], [0], [1], [0, 0, 1, 1], [], []>} : vector<2x64xf32>, vector<64x256xf32>, vector<2x256xf32> -> vector<2x256xf32>
    %110 = arith.addf %24, %109 : vector<2x256xf32>
    %111 = vector.extract_strided_slice %110 {offsets = [0, 0], sizes = [2, 192], strides = [1, 1]} : vector<2x256xf32> to vector<2x192xf32>
    %112 = arith.negf %111 : vector<2x192xf32>
    %113 = math.exp %112 : vector<2x192xf32>
    %cst_32 = arith.constant 1.000000e+00 : f32
    %114 = vector.broadcast %cst_32 : f32 to vector<2x192xf32>
    %115 = arith.addf %114, %113 : vector<2x192xf32>
    %116 = arith.divf %114, %115 : vector<2x192xf32>
    %117 = vector.extract_strided_slice %110 {offsets = [0, 192], sizes = [2, 64], strides = [1, 1]} : vector<2x256xf32> to vector<2x64xf32>
    %118 = math.tanh %117 : vector<2x64xf32>
    %119 = vector.extract_strided_slice %116 {offsets = [0, 0], sizes = [2, 64], strides = [1, 1]} : vector<2x192xf32> to vector<2x64xf32>
    %120 = vector.extract_strided_slice %116 {offsets = [0, 64], sizes = [2, 64], strides = [1, 1]} : vector<2x192xf32> to vector<2x64xf32>
    %121 = vector.extract_strided_slice %116 {offsets = [0, 128], sizes = [2, 64], strides = [1, 1]} : vector<2x192xf32> to vector<2x64xf32>
    %122 = arith.mulf %120, %98 : vector<2x64xf32>
    %123 = arith.mulf %119, %118 : vector<2x64xf32>
    %124 = arith.addf %122, %123 : vector<2x64xf32>
    %125 = math.tanh %124 : vector<2x64xf32>
    %126 = arith.mulf %121, %125 : vector<2x64xf32>
    %127 = vector.extract_strided_slice %126 {offsets = [0, 0], sizes = [2, 32], strides = [1, 1]} : vector<2x64xf32> to vector<2x32xf32>
    %c3 = arith.constant 3 : index
    %c0_33 = arith.constant 0 : index
    %c0_34 = arith.constant 0 : index
    %128 = vector.load %arg7[%c3, %c0_33, %c0_34] : memref<16x2x32xf32, #tpu.memory_space<vmem>>, vector<1x2x32xf32>
    %129 = vector.shape_cast %128 : vector<1x2x32xf32> to vector<2x32xf32>
    %130 = vector.shape_cast %127 : vector<2x32xf32> to vector<1x2x32xf32>
    tpu.vector_store %arg7[%c3, %c0_33, %c0_34], %130 {strides = array<i32>} : memref<16x2x32xf32, #tpu.memory_space<vmem>>, vector<1x2x32xf32>,
    %131 = vector.extract_strided_slice %126 {offsets = [0, 32], sizes = [2, 32], strides = [1, 1]} : vector<2x64xf32> to vector<2x32xf32>
    %c11 = arith.constant 11 : index
    %c0_35 = arith.constant 0 : index
    %c0_36 = arith.constant 0 : index
    %132 = vector.load %arg7[%c11, %c0_35, %c0_36] : memref<16x2x32xf32, #tpu.memory_space<vmem>>, vector<1x2x32xf32>
    %133 = vector.shape_cast %132 : vector<1x2x32xf32> to vector<2x32xf32>
    %134 = vector.shape_cast %131 : vector<2x32xf32> to vector<1x2x32xf32>
    tpu.vector_store %arg7[%c11, %c0_35, %c0_36], %134 {strides = array<i32>} : memref<16x2x32xf32, #tpu.memory_space<vmem>>, vector<1x2x32xf32>,
    %cst_37 = arith.constant dense<0.000000e+00> : vector<2x256xf32>
    %135 = tpu.matmul %126, %20, %cst_37 {dimension_numbers = #tpu.dot_dimension_numbers<[1], [0], [0], [1], [0, 0, 1, 1], [], []>} : vector<2x64xf32>, vector<64x256xf32>, vector<2x256xf32> -> vector<2x256xf32>
    %136 = arith.addf %25, %135 : vector<2x256xf32>
    %137 = vector.extract_strided_slice %136 {offsets = [0, 0], sizes = [2, 192], strides = [1, 1]} : vector<2x256xf32> to vector<2x192xf32>
    %138 = arith.negf %137 : vector<2x192xf32>
    %139 = math.exp %138 : vector<2x192xf32>
    %cst_38 = arith.constant 1.000000e+00 : f32
    %140 = vector.broadcast %cst_38 : f32 to vector<2x192xf32>
    %141 = arith.addf %140, %139 : vector<2x192xf32>
    %142 = arith.divf %140, %141 : vector<2x192xf32>
    %143 = vector.extract_strided_slice %136 {offsets = [0, 192], sizes = [2, 64], strides = [1, 1]} : vector<2x256xf32> to vector<2x64xf32>
    %144 = math.tanh %143 : vector<2x64xf32>
    %145 = vector.extract_strided_slice %142 {offsets = [0, 0], sizes = [2, 64], strides = [1, 1]} : vector<2x192xf32> to vector<2x64xf32>
    %146 = vector.extract_strided_slice %142 {offsets = [0, 64], sizes = [2, 64], strides = [1, 1]} : vector<2x192xf32> to vector<2x64xf32>
    %147 = vector.extract_strided_slice %142 {offsets = [0, 128], sizes = [2, 64], strides = [1, 1]} : vector<2x192xf32> to vector<2x64xf32>
    %148 = arith.mulf %146, %124 : vector<2x64xf32>
    %149 = arith.mulf %145, %144 : vector<2x64xf32>
    %150 = arith.addf %148, %149 : vector<2x64xf32>
    %151 = math.tanh %150 : vector<2x64xf32>
    %152 = arith.mulf %147, %151 : vector<2x64xf32>
    %153 = vector.extract_strided_slice %152 {offsets = [0, 0], sizes = [2, 32], strides = [1, 1]} : vector<2x64xf32> to vector<2x32xf32>
    %c4 = arith.constant 4 : index
    %c0_39 = arith.constant 0 : index
    %c0_40 = arith.constant 0 : index
    %154 = vector.load %arg7[%c4, %c0_39, %c0_40] : memref<16x2x32xf32, #tpu.memory_space<vmem>>, vector<1x2x32xf32>
    %155 = vector.shape_cast %154 : vector<1x2x32xf32> to vector<2x32xf32>
    %156 = vector.shape_cast %153 : vector<2x32xf32> to vector<1x2x32xf32>
    tpu.vector_store %arg7[%c4, %c0_39, %c0_40], %156 {strides = array<i32>} : memref<16x2x32xf32, #tpu.memory_space<vmem>>, vector<1x2x32xf32>,
    %157 = vector.extract_strided_slice %152 {offsets = [0, 32], sizes = [2, 32], strides = [1, 1]} : vector<2x64xf32> to vector<2x32xf32>
    %c12 = arith.constant 12 : index
    %c0_41 = arith.constant 0 : index
    %c0_42 = arith.constant 0 : index
    %158 = vector.load %arg7[%c12, %c0_41, %c0_42] : memref<16x2x32xf32, #tpu.memory_space<vmem>>, vector<1x2x32xf32>
    %159 = vector.shape_cast %158 : vector<1x2x32xf32> to vector<2x32xf32>
    %160 = vector.shape_cast %157 : vector<2x32xf32> to vector<1x2x32xf32>
    tpu.vector_store %arg7[%c12, %c0_41, %c0_42], %160 {strides = array<i32>} : memref<16x2x32xf32, #tpu.memory_space<vmem>>, vector<1x2x32xf32>,
    %cst_43 = arith.constant dense<0.000000e+00> : vector<2x256xf32>
    %161 = tpu.matmul %152, %20, %cst_43 {dimension_numbers = #tpu.dot_dimension_numbers<[1], [0], [0], [1], [0, 0, 1, 1], [], []>} : vector<2x64xf32>, vector<64x256xf32>, vector<2x256xf32> -> vector<2x256xf32>
    %162 = arith.addf %26, %161 : vector<2x256xf32>
    %163 = vector.extract_strided_slice %162 {offsets = [0, 0], sizes = [2, 192], strides = [1, 1]} : vector<2x256xf32> to vector<2x192xf32>
    %164 = arith.negf %163 : vector<2x192xf32>
    %165 = math.exp %164 : vector<2x192xf32>
    %cst_44 = arith.constant 1.000000e+00 : f32
    %166 = vector.broadcast %cst_44 : f32 to vector<2x192xf32>
    %167 = arith.addf %166, %165 : vector<2x192xf32>
    %168 = arith.divf %166, %167 : vector<2x192xf32>
    %169 = vector.extract_strided_slice %162 {offsets = [0, 192], sizes = [2, 64], strides = [1, 1]} : vector<2x256xf32> to vector<2x64xf32>
    %170 = math.tanh %169 : vector<2x64xf32>
    %171 = vector.extract_strided_slice %168 {offsets = [0, 0], sizes = [2, 64], strides = [1, 1]} : vector<2x192xf32> to vector<2x64xf32>
    %172 = vector.extract_strided_slice %168 {offsets = [0, 64], sizes = [2, 64], strides = [1, 1]} : vector<2x192xf32> to vector<2x64xf32>
    %173 = vector.extract_strided_slice %168 {offsets = [0, 128], sizes = [2, 64], strides = [1, 1]} : vector<2x192xf32> to vector<2x64xf32>
    %174 = arith.mulf %172, %150 : vector<2x64xf32>
    %175 = arith.mulf %171, %170 : vector<2x64xf32>
    %176 = arith.addf %174, %175 : vector<2x64xf32>
    %177 = math.tanh %176 : vector<2x64xf32>
    %178 = arith.mulf %173, %177 : vector<2x64xf32>
    %179 = vector.extract_strided_slice %178 {offsets = [0, 0], sizes = [2, 32], strides = [1, 1]} : vector<2x64xf32> to vector<2x32xf32>
    %c5 = arith.constant 5 : index
    %c0_45 = arith.constant 0 : index
    %c0_46 = arith.constant 0 : index
    %180 = vector.load %arg7[%c5, %c0_45, %c0_46] : memref<16x2x32xf32, #tpu.memory_space<vmem>>, vector<1x2x32xf32>
    %181 = vector.shape_cast %180 : vector<1x2x32xf32> to vector<2x32xf32>
    %182 = vector.shape_cast %179 : vector<2x32xf32> to vector<1x2x32xf32>
    tpu.vector_store %arg7[%c5, %c0_45, %c0_46], %182 {strides = array<i32>} : memref<16x2x32xf32, #tpu.memory_space<vmem>>, vector<1x2x32xf32>,
    %183 = vector.extract_strided_slice %178 {offsets = [0, 32], sizes = [2, 32], strides = [1, 1]} : vector<2x64xf32> to vector<2x32xf32>
    %c13 = arith.constant 13 : index
    %c0_47 = arith.constant 0 : index
    %c0_48 = arith.constant 0 : index
    %184 = vector.load %arg7[%c13, %c0_47, %c0_48] : memref<16x2x32xf32, #tpu.memory_space<vmem>>, vector<1x2x32xf32>
    %185 = vector.shape_cast %184 : vector<1x2x32xf32> to vector<2x32xf32>
    %186 = vector.shape_cast %183 : vector<2x32xf32> to vector<1x2x32xf32>
    tpu.vector_store %arg7[%c13, %c0_47, %c0_48], %186 {strides = array<i32>} : memref<16x2x32xf32, #tpu.memory_space<vmem>>, vector<1x2x32xf32>,
    %cst_49 = arith.constant dense<0.000000e+00> : vector<2x256xf32>
    %187 = tpu.matmul %178, %20, %cst_49 {dimension_numbers = #tpu.dot_dimension_numbers<[1], [0], [0], [1], [0, 0, 1, 1], [], []>} : vector<2x64xf32>, vector<64x256xf32>, vector<2x256xf32> -> vector<2x256xf32>
    %188 = arith.addf %27, %187 : vector<2x256xf32>
    %189 = vector.extract_strided_slice %188 {offsets = [0, 0], sizes = [2, 192], strides = [1, 1]} : vector<2x256xf32> to vector<2x192xf32>
    %190 = arith.negf %189 : vector<2x192xf32>
    %191 = math.exp %190 : vector<2x192xf32>
    %cst_50 = arith.constant 1.000000e+00 : f32
    %192 = vector.broadcast %cst_50 : f32 to vector<2x192xf32>
    %193 = arith.addf %192, %191 : vector<2x192xf32>
    %194 = arith.divf %192, %193 : vector<2x192xf32>
    %195 = vector.extract_strided_slice %188 {offsets = [0, 192], sizes = [2, 64], strides = [1, 1]} : vector<2x256xf32> to vector<2x64xf32>
    %196 = math.tanh %195 : vector<2x64xf32>
    %197 = vector.extract_strided_slice %194 {offsets = [0, 0], sizes = [2, 64], strides = [1, 1]} : vector<2x192xf32> to vector<2x64xf32>
    %198 = vector.extract_strided_slice %194 {offsets = [0, 64], sizes = [2, 64], strides = [1, 1]} : vector<2x192xf32> to vector<2x64xf32>
    %199 = vector.extract_strided_slice %194 {offsets = [0, 128], sizes = [2, 64], strides = [1, 1]} : vector<2x192xf32> to vector<2x64xf32>
    %200 = arith.mulf %198, %176 : vector<2x64xf32>
    %201 = arith.mulf %197, %196 : vector<2x64xf32>
    %202 = arith.addf %200, %201 : vector<2x64xf32>
    %203 = math.tanh %202 : vector<2x64xf32>
    %204 = arith.mulf %199, %203 : vector<2x64xf32>
    %205 = vector.extract_strided_slice %204 {offsets = [0, 0], sizes = [2, 32], strides = [1, 1]} : vector<2x64xf32> to vector<2x32xf32>
    %c6 = arith.constant 6 : index
    %c0_51 = arith.constant 0 : index
    %c0_52 = arith.constant 0 : index
    %206 = vector.load %arg7[%c6, %c0_51, %c0_52] : memref<16x2x32xf32, #tpu.memory_space<vmem>>, vector<1x2x32xf32>
    %207 = vector.shape_cast %206 : vector<1x2x32xf32> to vector<2x32xf32>
    %208 = vector.shape_cast %205 : vector<2x32xf32> to vector<1x2x32xf32>
    tpu.vector_store %arg7[%c6, %c0_51, %c0_52], %208 {strides = array<i32>} : memref<16x2x32xf32, #tpu.memory_space<vmem>>, vector<1x2x32xf32>,
    %209 = vector.extract_strided_slice %204 {offsets = [0, 32], sizes = [2, 32], strides = [1, 1]} : vector<2x64xf32> to vector<2x32xf32>
    %c14 = arith.constant 14 : index
    %c0_53 = arith.constant 0 : index
    %c0_54 = arith.constant 0 : index
    %210 = vector.load %arg7[%c14, %c0_53, %c0_54] : memref<16x2x32xf32, #tpu.memory_space<vmem>>, vector<1x2x32xf32>
    %211 = vector.shape_cast %210 : vector<1x2x32xf32> to vector<2x32xf32>
    %212 = vector.shape_cast %209 : vector<2x32xf32> to vector<1x2x32xf32>
    tpu.vector_store %arg7[%c14, %c0_53, %c0_54], %212 {strides = array<i32>} : memref<16x2x32xf32, #tpu.memory_space<vmem>>, vector<1x2x32xf32>,
    %cst_55 = arith.constant dense<0.000000e+00> : vector<2x256xf32>
    %213 = tpu.matmul %204, %20, %cst_55 {dimension_numbers = #tpu.dot_dimension_numbers<[1], [0], [0], [1], [0, 0, 1, 1], [], []>} : vector<2x64xf32>, vector<64x256xf32>, vector<2x256xf32> -> vector<2x256xf32>
    %214 = arith.addf %28, %213 : vector<2x256xf32>
    %215 = vector.extract_strided_slice %214 {offsets = [0, 0], sizes = [2, 192], strides = [1, 1]} : vector<2x256xf32> to vector<2x192xf32>
    %216 = arith.negf %215 : vector<2x192xf32>
    %217 = math.exp %216 : vector<2x192xf32>
    %cst_56 = arith.constant 1.000000e+00 : f32
    %218 = vector.broadcast %cst_56 : f32 to vector<2x192xf32>
    %219 = arith.addf %218, %217 : vector<2x192xf32>
    %220 = arith.divf %218, %219 : vector<2x192xf32>
    %221 = vector.extract_strided_slice %214 {offsets = [0, 192], sizes = [2, 64], strides = [1, 1]} : vector<2x256xf32> to vector<2x64xf32>
    %222 = math.tanh %221 : vector<2x64xf32>
    %223 = vector.extract_strided_slice %220 {offsets = [0, 0], sizes = [2, 64], strides = [1, 1]} : vector<2x192xf32> to vector<2x64xf32>
    %224 = vector.extract_strided_slice %220 {offsets = [0, 64], sizes = [2, 64], strides = [1, 1]} : vector<2x192xf32> to vector<2x64xf32>
    %225 = vector.extract_strided_slice %220 {offsets = [0, 128], sizes = [2, 64], strides = [1, 1]} : vector<2x192xf32> to vector<2x64xf32>
    %226 = arith.mulf %224, %202 : vector<2x64xf32>
    %227 = arith.mulf %223, %222 : vector<2x64xf32>
    %228 = arith.addf %226, %227 : vector<2x64xf32>
    %229 = math.tanh %228 : vector<2x64xf32>
    %230 = arith.mulf %225, %229 : vector<2x64xf32>
    %231 = vector.extract_strided_slice %230 {offsets = [0, 0], sizes = [2, 32], strides = [1, 1]} : vector<2x64xf32> to vector<2x32xf32>
    %c7 = arith.constant 7 : index
    %c0_57 = arith.constant 0 : index
    %c0_58 = arith.constant 0 : index
    %232 = vector.load %arg7[%c7, %c0_57, %c0_58] : memref<16x2x32xf32, #tpu.memory_space<vmem>>, vector<1x2x32xf32>
    %233 = vector.shape_cast %232 : vector<1x2x32xf32> to vector<2x32xf32>
    %234 = vector.shape_cast %231 : vector<2x32xf32> to vector<1x2x32xf32>
    tpu.vector_store %arg7[%c7, %c0_57, %c0_58], %234 {strides = array<i32>} : memref<16x2x32xf32, #tpu.memory_space<vmem>>, vector<1x2x32xf32>,
    %235 = vector.extract_strided_slice %230 {offsets = [0, 32], sizes = [2, 32], strides = [1, 1]} : vector<2x64xf32> to vector<2x32xf32>
    %c15 = arith.constant 15 : index
    %c0_59 = arith.constant 0 : index
    %c0_60 = arith.constant 0 : index
    %236 = vector.load %arg7[%c15, %c0_59, %c0_60] : memref<16x2x32xf32, #tpu.memory_space<vmem>>, vector<1x2x32xf32>
    %237 = vector.shape_cast %236 : vector<1x2x32xf32> to vector<2x32xf32>
    %238 = vector.shape_cast %235 : vector<2x32xf32> to vector<1x2x32xf32>
    tpu.vector_store %arg7[%c15, %c0_59, %c0_60], %238 {strides = array<i32>} : memref<16x2x32xf32, #tpu.memory_space<vmem>>, vector<1x2x32xf32>,
    %c0_61 = arith.constant 0 : index
    %c0_62 = arith.constant 0 : index
    %239 = vector.load %arg5[%c0_61, %c0_62] : memref<64x32xf32, #tpu.memory_space<vmem>>, vector<64x32xf32>
    %c0_63 = arith.constant 0 : index
    %c0_64 = arith.constant 0 : index
    %240 = vector.load %arg6[%c0_63, %c0_64] : memref<1x32xf32, #tpu.memory_space<vmem>>, vector<1x32xf32>
    %cst_65 = arith.constant dense<0.000000e+00> : vector<2x32xf32>
    %241 = tpu.matmul %230, %239, %cst_65 {dimension_numbers = #tpu.dot_dimension_numbers<[1], [0], [0], [1], [0, 0, 1, 1], [], []>} : vector<2x64xf32>, vector<64x32xf32>, vector<2x32xf32> -> vector<2x32xf32>
    %242 = vector.broadcast %240 : vector<1x32xf32> to vector<2x32xf32>
    %243 = arith.addf %241, %242 : vector<2x32xf32>
    %244 = math.tanh %243 : vector<2x32xf32>
    %c0_66 = arith.constant 0 : index
    %c0_67 = arith.constant 0 : index
    %245 = vector.load %arg8[%c0_66, %c0_67] : memref<2x32xf32, #tpu.memory_space<vmem>>, vector<2x32xf32>
    tpu.vector_store %arg8[%c0_66, %c0_67], %244 {strides = array<i32>} : memref<2x32xf32, #tpu.memory_space<vmem>>, vector<2x32xf32>,
    %cst_68 = arith.constant dense<0.000000e+00> : vector<2x32xf32>
    %246 = tpu.matmul %228, %239, %cst_68 {dimension_numbers = #tpu.dot_dimension_numbers<[1], [0], [0], [1], [0, 0, 1, 1], [], []>} : vector<2x64xf32>, vector<64x32xf32>, vector<2x32xf32> -> vector<2x32xf32>
    %247 = vector.broadcast %240 : vector<1x32xf32> to vector<2x32xf32>
    %248 = arith.addf %246, %247 : vector<2x32xf32>
    %249 = math.tanh %248 : vector<2x32xf32>
    %c0_69 = arith.constant 0 : index
    %c0_70 = arith.constant 0 : index
    %250 = vector.load %arg9[%c0_69, %c0_70] : memref<2x32xf32, #tpu.memory_space<vmem>>, vector<2x32xf32>
    tpu.vector_store %arg9[%c0_69, %c0_70], %249 {strides = array<i32>} : memref<2x32xf32, #tpu.memory_space<vmem>>, vector<2x32xf32>,
    return
  }
}

</mosaic_0001>

<llo_original>
// kernel: encoder_forward.1
$region0: #{encoder_forward.1}
  #allocation0 [shape = 'u32[]', space=smem, size = 0x4, offset = 0x4, fixed_abs, tag = 'smem constant byte address 0x4 - core index']
  #allocation1 [shape = 'u32[144,128]{1,0:T(1,128)}', space=vmem, size = 0x12000, scoped, tag = 'internal scratch']
  %s0 = inlined_call_operand.vmem [shape: s32[16,1], index: 0, kind: input, shape index: {}]
  %s1 = inlined_call_operand.vmem [shape: s32[16,1], index: 1, kind: input, shape index: {}]
  %s2 = inlined_call_operand.hbm [shape: f32[40,256], index: 2, kind: input, shape index: {}]
  %s3 = inlined_call_operand.vmem [shape: f32[1,256], index: 3, kind: input, shape index: {}]
  %s4 = inlined_call_operand.vmem [shape: f32[64,256], index: 4, kind: input, shape index: {}]
  %s5 = inlined_call_operand.vmem [shape: f32[64,32], index: 5, kind: input, shape index: {}]
  %s6 = inlined_call_operand.vmem [shape: f32[1,32], index: 6, kind: input, shape index: {}]
  %s7 = inlined_call_operand.hbm [shape: f32[16,2,32], index: 7, kind: output, shape index: {0}]
  %s8 = inlined_call_operand.hbm [shape: f32[2,32], index: 8, kind: output, shape index: {1}]
  %s9 = inlined_call_operand.hbm [shape: f32[2,32], index: 9, kind: output, shape index: {2}]
  %10 = xla_tuple %s7, %s8, %s9
  %s11 = sld [smem:[#allocation0]]
  $region58: #{encoder_forward.1} parent=0
    _
  %s13 = ssub.s32 1, %s11
  %s14 = scalar_select 0, %s13, %s11
  $region1: #{encoder_forward.1} parent=0
    #allocation2 [shape = 'u8[40960]{0}', space=vmem, size = 0xa000, scoped, tag = 'input window, operand 2, single buffered']
    #allocation3 [shape = 's32[1]{0}', space=sflag, size = 0x4, scoped, tag = 'scoped memory for encoder_forward.1']
    #allocation4 [shape = 's32[1]{0}', space=sflag, size = 0x4, scoped, tag = 'scoped memory for encoder_forward.1']
    #allocation5 [shape = 'u8[16384]{0}', space=vmem, size = 0x4000, scoped, tag = 'output window, operand 0, single buffered']
    #allocation6 [shape = 'u8[1024]{0}', space=vmem, size = 0x400, scoped, tag = 'output window, operand 1, single buffered']
    #allocation7 [shape = 's32[1]{0}', space=sflag, size = 0x4, scoped, tag = 'scoped memory for encoder_forward.1']
    #allocation8 [shape = 'u8[1024]{0}', space=vmem, size = 0x400, scoped, tag = 'output window, operand 2, single buffered']
    %15 = vsyncpa [#allocation3], 0
    %16 = vsyncpa [#allocation4], 0
    %17 = vsyncpa [#allocation7], 0
    // Predicated region
    $region2: #{encoder_forward.1} parent=1 // pred_check
      _
    $region3: #{encoder_forward.1} parent=1 // pred_check_branch
      %19 = sbr.rel (0) target = $region5
    $region4: #{encoder_forward.1} parent=1 // pred_region
      _
    $region5: #{encoder_forward.1} parent=1 // pred_fallthru
      _
    // Predicated region
    $region6: #{encoder_forward.1} parent=1 // pred_check
      _
    $region7: #{encoder_forward.1} parent=1 // pred_check_branch
      %21 = sbr.rel (0) target = $region9
    $region8: #{encoder_forward.1} parent=1 // pred_region
      _
    $region9: #{encoder_forward.1} parent=1 // pred_fallthru
      _
    // Predicated region
    $region10: #{encoder_forward.1} parent=1 // pred_check
      _
    $region11: #{encoder_forward.1} parent=1 // pred_check_branch
      %23 = sbr.rel (0) target = $region13
    $region12: #{encoder_forward.1} parent=1 // pred_region
      %s25 = ssub.s32 1280, 1280
      %26 = vsyncadd [#allocation3], %s25
      %s27 = sshll.u32 [#allocation2], 4
      %s28 = int_to_ptr.vmem [resolvable:$true] %s27
      %33 = dma.hbm_to_vmem [thread:$0]  %s2, 1280, %s28, [#allocation3], 256, 256, 16
    $region13: #{encoder_forward.1} parent=1 // pred_fallthru
      _
    // Predicated region
    $region14: #{encoder_forward.1} parent=1 // pred_check
      _
    $region15: #{encoder_forward.1} parent=1 // pred_check_branch
      %35 = sbr.rel (0) target = $region17
    $region16: #{encoder_forward.1} parent=1 // pred_region
      _
    $region17: #{encoder_forward.1} parent=1 // pred_fallthru
      _
    // Predicated region
    $region18: #{encoder_forward.1} parent=1 // pred_check
      _
    $region19: #{encoder_forward.1} parent=1 // pred_check_branch
      %37 = sbr.rel (0) target = $region21
    $region20: #{encoder_forward.1} parent=1 // pred_region
      _
    $region21: #{encoder_forward.1} parent=1 // pred_fallthru
      _
    // Predicated region
    $region22: #{encoder_forward.1} parent=1 // pred_check
      _
    $region23: #{encoder_forward.1} parent=1 // pred_check_branch
      %39 = sbr.rel (0) target = $region25
    $region24: #{encoder_forward.1} parent=1 // pred_region
      _
    $region25: #{encoder_forward.1} parent=1 // pred_fallthru
      _
    // Predicated region
    $region26: #{encoder_forward.1} parent=1 // pred_check
      _
    $region27: #{encoder_forward.1} parent=1 // pred_check_branch
      %41 = sbr.rel (0) target = $region29
    $region28: #{encoder_forward.1} parent=1 // pred_region
      _
    $region29: #{encoder_forward.1} parent=1 // pred_fallthru
      _
    // Predicated region
    $region30: #{encoder_forward.1} parent=1 // pred_check
      _
    $region31: #{encoder_forward.1} parent=1 // pred_check_branch
      %43 = sbr.rel (0) target = $region33
    $region32: #{encoder_forward.1} parent=1 // pred_region
      %44 = dma.done [#allocation3], 1280
    $region33: #{encoder_forward.1} parent=1 // pred_fallthru
      _
    %v45 = vlaneseq
    %v46 = vand.u32 %v45, 127
    %vm47 = vcmp.lt.s32.totalorder %v46, 20
    %v48 = vld [vmem:[%s0] sm:$0xff]
    %v49 = vld [vmem:[%s0 + $0x8] sm:$0xff]
    %v50 = vld [vmem:[%s1] sm:$0xff]
    %v51 = vld [vmem:[%s1 + $0x8] sm:$0xff]
    %v52 = vadd.s32 %v50, 20
    %v53 = vadd.s32 %v51, 20
    %54 = vset.pattern.permute.xlu0 0
    %55 = vperm.xlu0 %54, %v48
    %v56 = vpop.permute.xlu0 %55
    %57 = vset.pattern.permute.xlu0 0
    %58 = vperm.xlu0 %57, %v49
    %v59 = vpop.permute.xlu0 %58
    %60 = vset.pattern.permute.xlu0 0
    %61 = vperm.xlu0 %60, %v52
    %v62 = vpop.permute.xlu0 %61
    %63 = vset.pattern.permute.xlu0 0
    %64 = vperm.xlu0 %63, %v53
    %v65 = vpop.permute.xlu0 %64
    %v66 = vsel %vm47, %v56, %v62
    %v67 = vsel %vm47, %v59, %v65
    %vm68 = vcmp.eq.s32.totalorder %v46, %v66
    %vm69 = vcmp.eq.s32.totalorder %v46, %v67
    %v70 = vsel %vm68, 1, 0
    %v71 = vsel %vm69, 1, 0
    %v72 = vcvt.s32.f32 %v70
    %v73 = vcvt.s32.f32 %v71
    %v74 = vld [vmem:[#allocation2] sm:$0xff]
    %v75 = vld [vmem:[#allocation2 + $0x8] sm:$0xff]
    %v76 = vld [vmem:[#allocation2 + $0x10] sm:$0xff]
    %v77 = vld [vmem:[#allocation2 + $0x18] sm:$0xff]
    %v78 = vld [vmem:[#allocation2 + $0x20] sm:$0xff]
    %v79 = vld [vmem:[#allocation2 + $0x28] sm:$0xff]
    %v80 = vld [vmem:[#allocation2 + $0x30] sm:$0xff]
    %v81 = vld [vmem:[#allocation2 + $0x38] sm:$0xff]
    %v82 = vld [vmem:[#allocation2 + $0x40] sm:$0xff]
    %v83 = vld [vmem:[#allocation2 + $0x48] sm:$0xff]
    %v84 = vld [vmem:[%s3] sm:$0x3]
    %v86 = vlaneseq
    %v87 = vshrl.u32 %v86, 7
    %v88 = vsub.s32 0, %v87
    %v89 = vrot.slane %v84, %v88
    %v90 = vlaneseq
    %v91 = vshrl.u32 %v90, 7
    %v92 = vsub.s32 1, %v91
    %v93 = vrot.slane %v84, %v92
    %vm96 = vcmask 326656
    %v98 = vsel %vm96, %v72, 0
    %v101 = vsel %vm96, %v73, 0
    %103 = vmatprep.subr.mxu0 %v75
    %104 = vmatpush1.msra.mxu0 %v74
    %105 = vmatprep.subr.mxu0 %v77
    %106 = vmatpush1.msra.mxu0 %v76
    %107 = vmatprep.subr.mxu0 %v79
    %108 = vmatpush1.msra.mxu0 %v78
    %109 = vmatprep.subr.mxu0 %v81
    %110 = vmatpush1.msra.mxu0 %v80
    %111 = vmatprep.subr.mxu0 %v83
    %112 = vmatpush1.msra.mxu0 %v82
    %113 = vmatprep.subr.mxu0 0.0
    %114 = vmatpush1.msra.mxu0 0.0
    %115 = vmatprep.subr.mxu0 0.0
    %116 = vmatpush1.msra.mxu0 0.0
    %117 = vmatprep.subr.mxu0 0.0
    %118 = vmatpush1.msra.mxu0 0.0
    %119 = vmatprep.subr.mxu0 0.0
    %120 = vmatpush1.msra.mxu0 0.0
    %121 = vmatprep.subr.mxu0 0.0
    %122 = vmatpush1.msra.mxu0 0.0
    %123 = vmatprep.subr.mxu0 0.0
    %124 = vmatpush1.msra.mxu0 0.0
    %125 = vmatprep.subr.mxu0 0.0
    %126 = vmatpush1.msra.mxu0 0.0
    %127 = vmatprep.subr.mxu0 0.0
    %128 = vmatpush1.msra.mxu0 0.0
    %129 = vmatprep.subr.mxu0 0.0
    %130 = vmatpush1.msra.mxu0 0.0
    %131 = vmatprep.subr.mxu0 0.0
    %132 = vmatpush1.msra.mxu0 0.0
    %133 = vmatprep.subr.mxu0 0.0
    %134 = vmatpush1.msra.mxu0 0.0
    %135 = vmatprep.subr.mxu0 0.0
    %136 = vmatpush1.msra.mxu0 0.0
    %137 = vmatprep.subr.mxu0 0.0
    %138 = vmatpush1.msra.mxu0 0.0
    %139 = vmatprep.subr.mxu0 0.0
    %140 = vmatpush1.msra.mxu0 0.0
    %141 = vmatprep.subr.mxu0 0.0
    %142 = vmatpush1.msra.mxu0 0.0
    %143 = vmatprep.subr.mxu0 0.0
    %144 = vmatpush1.msra.mxu0 0.0
    %145 = vmatprep.subr.mxu0 0.0
    %146 = vmatpush1.msra.mxu0 0.0
    %147 = vmatprep.subr.mxu0 0.0
    %148 = vmatpush1.msra.mxu0 0.0
    %149 = vmatprep.subr.mxu0 0.0
    %150 = vmatpush1.msra.mxu0 0.0
    %151 = vmatprep.subr.mxu0 0.0
    %152 = vmatpush1.msra.mxu0 0.0
    %153 = vmatprep.subr.mxu0 0.0
    %154 = vmatpush1.msra.mxu0 0.0
    %155 = vmatprep.subr.mxu0 0.0
    %156 = vmatpush1.msra.mxu0 0.0
    %157 = vmatprep.subr.mxu0 0.0
    %158 = vmatpush1.msra.mxu0 0.0
    %159 = vmatprep.subr.mxu0 0.0
    %160 = vmatpush1.msra.mxu0 0.0
    %161 = vmatprep.subr.mxu0 0.0
    %162 = vmatpush1.msra.mxu0 0.0
    %163 = vmatprep.subr.mxu0 0.0
    %164 = vmatpush1.msra.mxu0 0.0
    %165 = vmatprep.subr.mxu0 0.0
    %166 = vmatpush1.msra.mxu0 0.0
    %167 = vmatprep.mubr.f32.mxu0 0.0
    %168 = vmatmul.mubr.f32.gmra.mrb[0].mxu0 %v98
    %v169 = vpop.f32.mrb[0].mxu0
    %v170 = vadd.f32 %v89, %v169
    %v171 = vpop.f32.mrb[0].mxu0
    %v172 = vadd.f32 %v93, %v171
    %173 = vmatprep.mubr.f32.mxu0 0.0
    %174 = vmatmul.mubr.f32.gmra.mrb[0].mxu0 %v101
    %v175 = vpop.f32.mrb[0].mxu0
    %v176 = vadd.f32 %v89, %v175
    %v177 = vpop.f32.mrb[0].mxu0
    %v178 = vadd.f32 %v93, %v177
    %179 = vdwg.mxu0
    %v180 = vld [vmem:[%s4] sm:$0xff]
    %v181 = vld [vmem:[%s4 + $0x8] sm:$0xff]
    %v182 = vld [vmem:[%s4 + $0x10] sm:$0xff]
    %v183 = vld [vmem:[%s4 + $0x18] sm:$0xff]
    %v184 = vld [vmem:[%s4 + $0x20] sm:$0xff]
    %v185 = vld [vmem:[%s4 + $0x28] sm:$0xff]
    %v186 = vld [vmem:[%s4 + $0x30] sm:$0xff]
    %v187 = vld [vmem:[%s4 + $0x38] sm:$0xff]
    %v188 = vld [vmem:[%s4 + $0x40] sm:$0xff]
    %v189 = vld [vmem:[%s4 + $0x48] sm:$0xff]
    %v190 = vld [vmem:[%s4 + $0x50] sm:$0xff]
    %v191 = vld [vmem:[%s4 + $0x58] sm:$0xff]
    %v192 = vld [vmem:[%s4 + $0x60] sm:$0xff]
    %v193 = vld [vmem:[%s4 + $0x68] sm:$0xff]
    %v194 = vld [vmem:[%s4 + $0x70] sm:$0xff]
    %v195 = vld [vmem:[%s4 + $0x78] sm:$0xff]
    %vm196 = vcmask 523264
    %v198 = vsel %vm196, 0.0, 0
    %200 = vmatprep.subr.mxu0 %v181
    %201 = vmatpush1.msra.mxu0 %v180
    %202 = vmatprep.subr.mxu0 %v183
    %203 = vmatpush1.msra.mxu0 %v182
    %204 = vmatprep.subr.mxu0 %v185
    %205 = vmatpush1.msra.mxu0 %v184
    %206 = vmatprep.subr.mxu0 %v187
    %207 = vmatpush1.msra.mxu0 %v186
    %208 = vmatprep.subr.mxu0 %v189
    %209 = vmatpush1.msra.mxu0 %v188
    %210 = vmatprep.subr.mxu0 %v191
    %211 = vmatpush1.msra.mxu0 %v190
    %212 = vmatprep.subr.mxu0 %v193
    %213 = vmatpush1.msra.mxu0 %v192
    %214 = vmatprep.subr.mxu0 %v195
    %215 = vmatpush1.msra.mxu0 %v194
    %216 = vmatprep.subr.mxu0 0.0
    %217 = vmatpush1.msra.mxu0 0.0
    %218 = vmatprep.subr.mxu0 0.0
    %219 = vmatpush1.msra.mxu0 0.0
    %220 = vmatprep.subr.mxu0 0.0
    %221 = vmatpush1.msra.mxu0 0.0
    %222 = vmatprep.subr.mxu0 0.0
    %223 = vmatpush1.msra.mxu0 0.0
    %224 = vmatprep.subr.mxu0 0.0
    %225 = vmatpush1.msra.mxu0 0.0
    %226 = vmatprep.subr.mxu0 0.0
    %227 = vmatpush1.msra.mxu0 0.0
    %228 = vmatprep.subr.mxu0 0.0
    %229 = vmatpush1.msra.mxu0 0.0
    %230 = vmatprep.subr.mxu0 0.0
    %231 = vmatpush1.msra.mxu0 0.0
    %232 = vmatprep.subr.mxu0 0.0
    %233 = vmatpush1.msra.mxu0 0.0
    %234 = vmatprep.subr.mxu0 0.0
    %235 = vmatpush1.msra.mxu0 0.0
    %236 = vmatprep.subr.mxu0 0.0
    %237 = vmatpush1.msra.mxu0 0.0
    %238 = vmatprep.subr.mxu0 0.0
    %239 = vmatpush1.msra.mxu0 0.0
    %240 = vmatprep.subr.mxu0 0.0
    %241 = vmatpush1.msra.mxu0 0.0
    %242 = vmatprep.subr.mxu0 0.0
    %243 = vmatpush1.msra.mxu0 0.0
    %244 = vmatprep.subr.mxu0 0.0
    %245 = vmatpush1.msra.mxu0 0.0
    %246 = vmatprep.subr.mxu0 0.0
    %247 = vmatpush1.msra.mxu0 0.0
    %248 = vmatprep.subr.mxu0 0.0
    %249 = vmatpush1.msra.mxu0 0.0
    %250 = vmatprep.subr.mxu0 0.0
    %251 = vmatpush1.msra.mxu0 0.0
    %252 = vmatprep.subr.mxu0 0.0
    %253 = vmatpush1.msra.mxu0 0.0
    %254 = vmatprep.subr.mxu0 0.0
    %255 = vmatpush1.msra.mxu0 0.0
    %256 = vmatprep.subr.mxu0 0.0
    %257 = vmatpush1.msra.mxu0 0.0
    %258 = vmatprep.subr.mxu0 0.0
    %259 = vmatpush1.msra.mxu0 0.0
    %260 = vmatprep.subr.mxu0 0.0
    %261 = vmatpush1.msra.mxu0 0.0
    %262 = vmatprep.subr.mxu0 0.0
    %263 = vmatpush1.msra.mxu0 0.0
    %264 = vmatprep.mubr.f32.mxu0 0.0
    %265 = vmatmul.mubr.f32.gmra.mrb[0].mxu0 %v198
    %v266 = vpop.f32.mrb[0].mxu0
    %v267 = vadd.f32 0.0, %v266
    %v268 = vpop.f32.mrb[0].mxu0
    %v269 = vadd.f32 0.0, %v268
    %270 = vdwg.mxu0
    %v271 = vadd.f32 %v170, %v267
    %v272 = vadd.f32 %v172, %v269
    %v273 = vxor.u32 %v271, 2147483648
    %v274 = vxor.u32 %v272, 2147483648
    %v275 = vmul.f32 %v273, 1.442695
    %v276 = vpow.pop %v275
    %v277 = vmul.f32 %v274, 1.442695
    %v278 = vpow.pop %v277
    %v279 = vadd.f32 %v276, 1.0
    %v280 = vadd.f32 %v278, 1.0
    %v281 = vrcp.pop %v279
    %v282 = vmul.f32 1.0, %v281
    %v283 = vrcp.pop %v280
    %v284 = vmul.f32 1.0, %v283
    %v285 = vtanh.pop %v272
    %v286 = vmul.f32 %v282, 0.0
    %288 = vrot.lane.b32.xlu0 %v285, 64
    %v289 = vpop.permute.xlu0 %288
    %v291 = vmul.f32 %v282, %v289
    %293 = vrot.lane.b32.xlu0 %v291, 64
    %v294 = vpop.permute.xlu0 %293
    %v296 = vadd.f32 %v286, %v294
    %v297 = vtanh.pop %v296
    %299 = vrot.lane.b32.xlu0 %v297, 64
    %v300 = vpop.permute.xlu0 %299
    %v302 = vmul.f32 %v284, %v300
    %vm303 = vcmask 254976
    %304 = vst.msk [vmem:[#allocation5] sm:$0x3] %vm303, %v302
    %306 = vrot.lane.b32.xlu0 %v302, 96
    %v307 = vpop.permute.xlu0 %306
    %s309 = scalar_lea.vmem [#allocation5], 16
    %310 = vst.msk [vmem:[%s309] sm:$0x3] %vm303, %v307
    %v311 = vsel %vm196, %v302, 0
    %313 = vmatprep.subr.mxu0 %v181
    %314 = vmatpush1.msra.mxu0 %v180
    %315 = vmatprep.subr.mxu0 %v183
    %316 = vmatpush1.msra.mxu0 %v182
    %317 = vmatprep.subr.mxu0 %v185
    %318 = vmatpush1.msra.mxu0 %v184
    %319 = vmatprep.subr.mxu0 %v187
    %320 = vmatpush1.msra.mxu0 %v186
    %321 = vmatprep.subr.mxu0 %v189
    %322 = vmatpush1.msra.mxu0 %v188
    %323 = vmatprep.subr.mxu0 %v191
    %324 = vmatpush1.msra.mxu0 %v190
    %325 = vmatprep.subr.mxu0 %v193
    %326 = vmatpush1.msra.mxu0 %v192
    %327 = vmatprep.subr.mxu0 %v195
    %328 = vmatpush1.msra.mxu0 %v194
    %329 = vmatprep.subr.mxu0 0.0
    %330 = vmatpush1.msra.mxu0 0.0
    %331 = vmatprep.subr.mxu0 0.0
    %332 = vmatpush1.msra.mxu0 0.0
    %333 = vmatprep.subr.mxu0 0.0
    %334 = vmatpush1.msra.mxu0 0.0
    %335 = vmatprep.subr.mxu0 0.0
    %336 = vmatpush1.msra.mxu0 0.0
    %337 = vmatprep.subr.mxu0 0.0
    %338 = vmatpush1.msra.mxu0 0.0
    %339 = vmatprep.subr.mxu0 0.0
    %340 = vmatpush1.msra.mxu0 0.0
    %341 = vmatprep.subr.mxu0 0.0
    %342 = vmatpush1.msra.mxu0 0.0
    %343 = vmatprep.subr.mxu0 0.0
    %344 = vmatpush1.msra.mxu0 0.0
    %345 = vmatprep.subr.mxu0 0.0
    %346 = vmatpush1.msra.mxu0 0.0
    %347 = vmatprep.subr.mxu0 0.0
    %348 = vmatpush1.msra.mxu0 0.0
    %349 = vmatprep.subr.mxu0 0.0
    %350 = vmatpush1.msra.mxu0 0.0
    %351 = vmatprep.subr.mxu0 0.0
    %352 = vmatpush1.msra.mxu0 0.0
    %353 = vmatprep.subr.mxu0 0.0
    %354 = vmatpush1.msra.mxu0 0.0
    %355 = vmatprep.subr.mxu0 0.0
    %356 = vmatpush1.msra.mxu0 0.0
    %357 = vmatprep.subr.mxu0 0.0
    %358 = vmatpush1.msra.mxu0 0.0
    %359 = vmatprep.subr.mxu0 0.0
    %360 = vmatpush1.msra.mxu0 0.0
    %361 = vmatprep.subr.mxu0 0.0
    %362 = vmatpush1.msra.mxu0 0.0
    %363 = vmatprep.subr.mxu0 0.0
    %364 = vmatpush1.msra.mxu0 0.0
    %365 = vmatprep.subr.mxu0 0.0
    %366 = vmatpush1.msra.mxu0 0.0
    %367 = vmatprep.subr.mxu0 0.0
    %368 = vmatpush1.msra.mxu0 0.0
    %369 = vmatprep.subr.mxu0 0.0
    %370 = vmatpush1.msra.mxu0 0.0
    %371 = vmatprep.subr.mxu0 0.0
    %372 = vmatpush1.msra.mxu0 0.0
    %373 = vmatprep.subr.mxu0 0.0
    %374 = vmatpush1.msra.mxu0 0.0
    %375 = vmatprep.subr.mxu0 0.0
    %376 = vmatpush1.msra.mxu0 0.0
    %377 = vmatprep.mubr.f32.mxu0 0.0
    %378 = vmatmul.mubr.f32.gmra.mrb[0].mxu0 %v311
    %v379 = vpop.f32.mrb[0].mxu0
    %v380 = vadd.f32 0.0, %v379
    %v381 = vpop.f32.mrb[0].mxu0
    %v382 = vadd.f32 0.0, %v381
    %383 = vdwg.mxu0
    %v386 = vrot.slane %v380, 6
    %v387 = vrot.slane %v382, 6
    %v390 = vadd.f32 %v170, %v386
    %v391 = vadd.f32 %v172, %v387
    %v392 = vxor.u32 %v390, 2147483648
    %v393 = vxor.u32 %v391, 2147483648
    %v394 = vmul.f32 %v392, 1.442695
    %v395 = vpow.pop %v394
    %v396 = vmul.f32 %v393, 1.442695
    %v397 = vpow.pop %v396
    %v398 = vadd.f32 %v395, 1.0
    %v399 = vadd.f32 %v397, 1.0
    %v400 = vrcp.pop %v398
    %v401 = vmul.f32 1.0, %v400
    %v402 = vrcp.pop %v399
    %v403 = vmul.f32 1.0, %v402
    %v404 = vtanh.pop %v391
    %v406 = vrot.slane %v296, 6
    %v408 = vmul.f32 %v401, %v406
    %410 = vrot.lane.b32.xlu0 %v404, 64
    %v411 = vpop.permute.xlu0 %410
    %v413 = vmul.f32 %v401, %v411
    %415 = vrot.lane.b32.xlu0 %v413, 64
    %v416 = vpop.permute.xlu0 %415
    %v418 = vadd.f32 %v408, %v416
    %v419 = vtanh.pop %v418
    %421 = vrot.lane.b32.xlu0 %v419, 64
    %v422 = vpop.permute.xlu0 %421
    %v424 = vmul.f32 %v403, %v422
    %s425 = scalar_lea.vmem [#allocation5], 2
    %vm426 = vcmask 257026
    %427 = vst.msk [vmem:[%s425 - $0x2] sm:$0xc] %vm426, %v424
    %429 = vrot.lane.b32.xlu0 %v424, 96
    %v430 = vpop.permute.xlu0 %429
    %s432 = scalar_lea.vmem [#allocation5], 18
    %433 = vst.msk [vmem:[%s432 - $0x2] sm:$0xc] %vm426, %v430
    %v434 = vrot.slane %v424, 2
    %v435 = vsel %vm196, %v434, 0
    %437 = vmatprep.subr.mxu0 %v181
    %438 = vmatpush1.msra.mxu0 %v180
    %439 = vmatprep.subr.mxu0 %v183
    %440 = vmatpush1.msra.mxu0 %v182
    %441 = vmatprep.subr.mxu0 %v185
    %442 = vmatpush1.msra.mxu0 %v184
    %443 = vmatprep.subr.mxu0 %v187
    %444 = vmatpush1.msra.mxu0 %v186
    %445 = vmatprep.subr.mxu0 %v189
    %446 = vmatpush1.msra.mxu0 %v188
    %447 = vmatprep.subr.mxu0 %v191
    %448 = vmatpush1.msra.mxu0 %v190
    %449 = vmatprep.subr.mxu0 %v193
    %450 = vmatpush1.msra.mxu0 %v192
    %451 = vmatprep.subr.mxu0 %v195
    %452 = vmatpush1.msra.mxu0 %v194
    %453 = vmatprep.subr.mxu0 0.0
    %454 = vmatpush1.msra.mxu0 0.0
    %455 = vmatprep.subr.mxu0 0.0
    %456 = vmatpush1.msra.mxu0 0.0
    %457 = vmatprep.subr.mxu0 0.0
    %458 = vmatpush1.msra.mxu0 0.0
    %459 = vmatprep.subr.mxu0 0.0
    %460 = vmatpush1.msra.mxu0 0.0
    %461 = vmatprep.subr.mxu0 0.0
    %462 = vmatpush1.msra.mxu0 0.0
    %463 = vmatprep.subr.mxu0 0.0
    %464 = vmatpush1.msra.mxu0 0.0
    %465 = vmatprep.subr.mxu0 0.0
    %466 = vmatpush1.msra.mxu0 0.0
    %467 = vmatprep.subr.mxu0 0.0
    %468 = vmatpush1.msra.mxu0 0.0
    %469 = vmatprep.subr.mxu0 0.0
    %470 = vmatpush1.msra.mxu0 0.0
    %471 = vmatprep.subr.mxu0 0.0
    %472 = vmatpush1.msra.mxu0 0.0
    %473 = vmatprep.subr.mxu0 0.0
    %474 = vmatpush1.msra.mxu0 0.0
    %475 = vmatprep.subr.mxu0 0.0
    %476 = vmatpush1.msra.mxu0 0.0
    %477 = vmatprep.subr.mxu0 0.0
    %478 = vmatpush1.msra.mxu0 0.0
    %479 = vmatprep.subr.mxu0 0.0
    %480 = vmatpush1.msra.mxu0 0.0
    %481 = vmatprep.subr.mxu0 0.0
    %482 = vmatpush1.msra.mxu0 0.0
    %483 = vmatprep.subr.mxu0 0.0
    %484 = vmatpush1.msra.mxu0 0.0
    %485 = vmatprep.subr.mxu0 0.0
    %486 = vmatpush1.msra.mxu0 0.0
    %487 = vmatprep.subr.mxu0 0.0
    %488 = vmatpush1.msra.mxu0 0.0
    %489 = vmatprep.subr.mxu0 0.0
    %490 = vmatpush1.msra.mxu0 0.0
    %491 = vmatprep.subr.mxu0 0.0
    %492 = vmatpush1.msra.mxu0 0.0
    %493 = vmatprep.subr.mxu0 0.0
    %494 = vmatpush1.msra.mxu0 0.0
    %495 = vmatprep.subr.mxu0 0.0
    %496 = vmatpush1.msra.mxu0 0.0
    %497 = vmatprep.subr.mxu0 0.0
    %498 = vmatpush1.msra.mxu0 0.0
    %499 = vmatprep.subr.mxu0 0.0
    %500 = vmatpush1.msra.mxu0 0.0
    %501 = vmatprep.mubr.f32.mxu0 0.0
    %502 = vmatmul.mubr.f32.gmra.mrb[0].mxu0 %v435
    %v503 = vpop.f32.mrb[0].mxu0
    %v504 = vadd.f32 0.0, %v503
    %v505 = vpop.f32.mrb[0].mxu0
    %v506 = vadd.f32 0.0, %v505
    %507 = vdwg.mxu0
    %v510 = vrot.slane %v504, 4
    %v511 = vrot.slane %v506, 4
    %v514 = vadd.f32 %v170, %v510
    %v515 = vadd.f32 %v172, %v511
    %v516 = vxor.u32 %v514, 2147483648
    %v517 = vxor.u32 %v515, 2147483648
    %v518 = vmul.f32 %v516, 1.442695
    %v519 = vpow.pop %v518
    %v520 = vmul.f32 %v517, 1.442695
    %v521 = vpow.pop %v520
    %v522 = vadd.f32 %v519, 1.0
    %v523 = vadd.f32 %v521, 1.0
    %v524 = vrcp.pop %v522
    %v525 = vmul.f32 1.0, %v524
    %v526 = vrcp.pop %v523
    %v527 = vmul.f32 1.0, %v526
    %v528 = vtanh.pop %v515
    %v530 = vrot.slane %v418, 6
    %v532 = vmul.f32 %v525, %v530
    %534 = vrot.lane.b32.xlu0 %v528, 64
    %v535 = vpop.permute.xlu0 %534
    %v537 = vmul.f32 %v525, %v535
    %539 = vrot.lane.b32.xlu0 %v537, 64
    %v540 = vpop.permute.xlu0 %539
    %v542 = vadd.f32 %v532, %v540
    %v543 = vtanh.pop %v542
    %545 = vrot.lane.b32.xlu0 %v543, 64
    %v546 = vpop.permute.xlu0 %545
    %v548 = vmul.f32 %v527, %v546
    %s549 = scalar_lea.vmem [#allocation5], 4
    %vm550 = vcmask 259076
    %551 = vst.msk [vmem:[%s549 - $0x4] sm:$0x30] %vm550, %v548
    %553 = vrot.lane.b32.xlu0 %v548, 96
    %v554 = vpop.permute.xlu0 %553
    %s556 = scalar_lea.vmem [#allocation5], 20
    %557 = vst.msk [vmem:[%s556 - $0x4] sm:$0x30] %vm550, %v554
    %v558 = vrot.slane %v548, 4
    %v559 = vsel %vm196, %v558, 0
    %561 = vmatprep.subr.mxu0 %v181
    %562 = vmatpush1.msra.mxu0 %v180
    %563 = vmatprep.subr.mxu0 %v183
    %564 = vmatpush1.msra.mxu0 %v182
    %565 = vmatprep.subr.mxu0 %v185
    %566 = vmatpush1.msra.mxu0 %v184
    %567 = vmatprep.subr.mxu0 %v187
    %568 = vmatpush1.msra.mxu0 %v186
    %569 = vmatprep.subr.mxu0 %v189
    %570 = vmatpush1.msra.mxu0 %v188
    %571 = vmatprep.subr.mxu0 %v191
    %572 = vmatpush1.msra.mxu0 %v190
    %573 = vmatprep.subr.mxu0 %v193
    %574 = vmatpush1.msra.mxu0 %v192
    %575 = vmatprep.subr.mxu0 %v195
    %576 = vmatpush1.msra.mxu0 %v194
    %577 = vmatprep.subr.mxu0 0.0
    %578 = vmatpush1.msra.mxu0 0.0
    %579 = vmatprep.subr.mxu0 0.0
    %580 = vmatpush1.msra.mxu0 0.0
    %581 = vmatprep.subr.mxu0 0.0
    %582 = vmatpush1.msra.mxu0 0.0
    %583 = vmatprep.subr.mxu0 0.0
    %584 = vmatpush1.msra.mxu0 0.0
    %585 = vmatprep.subr.mxu0 0.0
    %586 = vmatpush1.msra.mxu0 0.0
    %587 = vmatprep.subr.mxu0 0.0
    %588 = vmatpush1.msra.mxu0 0.0
    %589 = vmatprep.subr.mxu0 0.0
    %590 = vmatpush1.msra.mxu0 0.0
    %591 = vmatprep.subr.mxu0 0.0
    %592 = vmatpush1.msra.mxu0 0.0
    %593 = vmatprep.subr.mxu0 0.0
    %594 = vmatpush1.msra.mxu0 0.0
    %595 = vmatprep.subr.mxu0 0.0
    %596 = vmatpush1.msra.mxu0 0.0
    %597 = vmatprep.subr.mxu0 0.0
    %598 = vmatpush1.msra.mxu0 0.0
    %599 = vmatprep.subr.mxu0 0.0
    %600 = vmatpush1.msra.mxu0 0.0
    %601 = vmatprep.subr.mxu0 0.0
    %602 = vmatpush1.msra.mxu0 0.0
    %603 = vmatprep.subr.mxu0 0.0
    %604 = vmatpush1.msra.mxu0 0.0
    %605 = vmatprep.subr.mxu0 0.0
    %606 = vmatpush1.msra.mxu0 0.0
    %607 = vmatprep.subr.mxu0 0.0
    %608 = vmatpush1.msra.mxu0 0.0
    %609 = vmatprep.subr.mxu0 0.0
    %610 = vmatpush1.msra.mxu0 0.0
    %611 = vmatprep.subr.mxu0 0.0
    %612 = vmatpush1.msra.mxu0 0.0
    %613 = vmatprep.subr.mxu0 0.0
    %614 = vmatpush1.msra.mxu0 0.0
    %615 = vmatprep.subr.mxu0 0.0
    %616 = vmatpush1.msra.mxu0 0.0
    %617 = vmatprep.subr.mxu0 0.0
    %618 = vmatpush1.msra.mxu0 0.0
    %619 = vmatprep.subr.mxu0 0.0
    %620 = vmatpush1.msra.mxu0 0.0
    %621 = vmatprep.subr.mxu0 0.0
    %622 = vmatpush1.msra.mxu0 0.0
    %623 = vmatprep.subr.mxu0 0.0
    %624 = vmatpush1.msra.mxu0 0.0
    %625 = vmatprep.mubr.f32.mxu0 0.0
    %626 = vmatmul.mubr.f32.gmra.mrb[0].mxu0 %v559
    %v627 = vpop.f32.mrb[0].mxu0
    %v628 = vadd.f32 0.0, %v627
    %v629 = vpop.f32.mrb[0].mxu0
    %v630 = vadd.f32 0.0, %v629
    %631 = vdwg.mxu0
    %v634 = vrot.slane %v628, 2
    %v635 = vrot.slane %v630, 2
    %v638 = vadd.f32 %v170, %v634
    %v639 = vadd.f32 %v172, %v635
    %v640 = vxor.u32 %v638, 2147483648
    %v641 = vxor.u32 %v639, 2147483648
    %v642 = vmul.f32 %v640, 1.442695
    %v643 = vpow.pop %v642
    %v644 = vmul.f32 %v641, 1.442695
    %v645 = vpow.pop %v644
    %v646 = vadd.f32 %v643, 1.0
    %v647 = vadd.f32 %v645, 1.0
    %v648 = vrcp.pop %v646
    %v649 = vmul.f32 1.0, %v648
    %v650 = vrcp.pop %v647
    %v651 = vmul.f32 1.0, %v650
    %v652 = vtanh.pop %v639
    %v654 = vrot.slane %v542, 6
    %v656 = vmul.f32 %v649, %v654
    %658 = vrot.lane.b32.xlu0 %v652, 64
    %v659 = vpop.permute.xlu0 %658
    %v661 = vmul.f32 %v649, %v659
    %663 = vrot.lane.b32.xlu0 %v661, 64
    %v664 = vpop.permute.xlu0 %663
    %v666 = vadd.f32 %v656, %v664
    %v667 = vtanh.pop %v666
    %669 = vrot.lane.b32.xlu0 %v667, 64
    %v670 = vpop.permute.xlu0 %669
    %v672 = vmul.f32 %v651, %v670
    %s673 = scalar_lea.vmem [#allocation5], 6
    %vm674 = vcmask 261126
    %675 = vst.msk [vmem:[%s673 - $0x6] sm:$0xc0] %vm674, %v672
    %677 = vrot.lane.b32.xlu0 %v672, 96
    %v678 = vpop.permute.xlu0 %677
    %s680 = scalar_lea.vmem [#allocation5], 22
    %681 = vst.msk [vmem:[%s680 - $0x6] sm:$0xc0] %vm674, %v678
    %v682 = vrot.slane %v672, 6
    %v683 = vsel %vm196, %v682, 0
    %685 = vmatprep.subr.mxu0 %v181
    %686 = vmatpush1.msra.mxu0 %v180
    %687 = vmatprep.subr.mxu0 %v183
    %688 = vmatpush1.msra.mxu0 %v182
    %689 = vmatprep.subr.mxu0 %v185
    %690 = vmatpush1.msra.mxu0 %v184
    %691 = vmatprep.subr.mxu0 %v187
    %692 = vmatpush1.msra.mxu0 %v186
    %693 = vmatprep.subr.mxu0 %v189
    %694 = vmatpush1.msra.mxu0 %v188
    %695 = vmatprep.subr.mxu0 %v191
    %696 = vmatpush1.msra.mxu0 %v190
    %697 = vmatprep.subr.mxu0 %v193
    %698 = vmatpush1.msra.mxu0 %v192
    %699 = vmatprep.subr.mxu0 %v195
    %700 = vmatpush1.msra.mxu0 %v194
    %701 = vmatprep.subr.mxu0 0.0
    %702 = vmatpush1.msra.mxu0 0.0
    %703 = vmatprep.subr.mxu0 0.0
    %704 = vmatpush1.msra.mxu0 0.0
    %705 = vmatprep.subr.mxu0 0.0
    %706 = vmatpush1.msra.mxu0 0.0
    %707 = vmatprep.subr.mxu0 0.0
    %708 = vmatpush1.msra.mxu0 0.0
    %709 = vmatprep.subr.mxu0 0.0
    %710 = vmatpush1.msra.mxu0 0.0
    %711 = vmatprep.subr.mxu0 0.0
    %712 = vmatpush1.msra.mxu0 0.0
    %713 = vmatprep.subr.mxu0 0.0
    %714 = vmatpush1.msra.mxu0 0.0
    %715 = vmatprep.subr.mxu0 0.0
    %716 = vmatpush1.msra.mxu0 0.0
    %717 = vmatprep.subr.mxu0 0.0
    %718 = vmatpush1.msra.mxu0 0.0
    %719 = vmatprep.subr.mxu0 0.0
    %720 = vmatpush1.msra.mxu0 0.0
    %721 = vmatprep.subr.mxu0 0.0
    %722 = vmatpush1.msra.mxu0 0.0
    %723 = vmatprep.subr.mxu0 0.0
    %724 = vmatpush1.msra.mxu0 0.0
    %725 = vmatprep.subr.mxu0 0.0
    %726 = vmatpush1.msra.mxu0 0.0
    %727 = vmatprep.subr.mxu0 0.0
    %728 = vmatpush1.msra.mxu0 0.0
    %729 = vmatprep.subr.mxu0 0.0
    %730 = vmatpush1.msra.mxu0 0.0
    %731 = vmatprep.subr.mxu0 0.0
    %732 = vmatpush1.msra.mxu0 0.0
    %733 = vmatprep.subr.mxu0 0.0
    %734 = vmatpush1.msra.mxu0 0.0
    %735 = vmatprep.subr.mxu0 0.0
    %736 = vmatpush1.msra.mxu0 0.0
    %737 = vmatprep.subr.mxu0 0.0
    %738 = vmatpush1.msra.mxu0 0.0
    %739 = vmatprep.subr.mxu0 0.0
    %740 = vmatpush1.msra.mxu0 0.0
    %741 = vmatprep.subr.mxu0 0.0
    %742 = vmatpush1.msra.mxu0 0.0
    %743 = vmatprep.subr.mxu0 0.0
    %744 = vmatpush1.msra.mxu0 0.0
    %745 = vmatprep.subr.mxu0 0.0
    %746 = vmatpush1.msra.mxu0 0.0
    %747 = vmatprep.subr.mxu0 0.0
    %748 = vmatpush1.msra.mxu0 0.0
    %749 = vmatprep.mubr.f32.mxu0 0.0
    %750 = vmatmul.mubr.f32.gmra.mrb[0].mxu0 %v683
    %v751 = vpop.f32.mrb[0].mxu0
    %v752 = vadd.f32 0.0, %v751
    %v753 = vpop.f32.mrb[0].mxu0
    %v754 = vadd.f32 0.0, %v753
    %755 = vdwg.mxu0
    %v756 = vadd.f32 %v176, %v752
    %v757 = vadd.f32 %v178, %v754
    %v758 = vxor.u32 %v756, 2147483648
    %v759 = vxor.u32 %v757, 2147483648
    %v760 = vmul.f32 %v758, 1.442695
    %v761 = vpow.pop %v760
    %v762 = vmul.f32 %v759, 1.442695
    %v763 = vpow.pop %v762
    %v764 = vadd.f32 %v761, 1.0
    %v765 = vadd.f32 %v763, 1.0
    %v766 = vrcp.pop %v764
    %v767 = vmul.f32 1.0, %v766
    %v768 = vrcp.pop %v765
    %v769 = vmul.f32 1.0, %v768
    %v770 = vtanh.pop %v757
    %v772 = vrot.slane %v666, 6
    %v774 = vmul.f32 %v767, %v772
    %776 = vrot.lane.b32.xlu0 %v770, 64
    %v777 = vpop.permute.xlu0 %776
    %v779 = vmul.f32 %v767, %v777
    %781 = vrot.lane.b32.xlu0 %v779, 64
    %v782 = vpop.permute.xlu0 %781
    %v784 = vadd.f32 %v774, %v782
    %v785 = vtanh.pop %v784
    %787 = vrot.lane.b32.xlu0 %v785, 64
    %v788 = vpop.permute.xlu0 %787
    %v790 = vmul.f32 %v769, %v788
    %s791 = scalar_lea.vmem [#allocation5], 8
    %792 = vst.msk [vmem:[%s791] sm:$0x3] %vm303, %v790
    %794 = vrot.lane.b32.xlu0 %v790, 96
    %v795 = vpop.permute.xlu0 %794
    %s797 = scalar_lea.vmem [#allocation5], 24
    %798 = vst.msk [vmem:[%s797] sm:$0x3] %vm303, %v795
    %v799 = vsel %vm196, %v790, 0
    %801 = vmatprep.subr.mxu0 %v181
    %802 = vmatpush1.msra.mxu0 %v180
    %803 = vmatprep.subr.mxu0 %v183
    %804 = vmatpush1.msra.mxu0 %v182
    %805 = vmatprep.subr.mxu0 %v185
    %806 = vmatpush1.msra.mxu0 %v184
    %807 = vmatprep.subr.mxu0 %v187
    %808 = vmatpush1.msra.mxu0 %v186
    %809 = vmatprep.subr.mxu0 %v189
    %810 = vmatpush1.msra.mxu0 %v188
    %811 = vmatprep.subr.mxu0 %v191
    %812 = vmatpush1.msra.mxu0 %v190
    %813 = vmatprep.subr.mxu0 %v193
    %814 = vmatpush1.msra.mxu0 %v192
    %815 = vmatprep.subr.mxu0 %v195
    %816 = vmatpush1.msra.mxu0 %v194
    %817 = vmatprep.subr.mxu0 0.0
    %818 = vmatpush1.msra.mxu0 0.0
    %819 = vmatprep.subr.mxu0 0.0
    %820 = vmatpush1.msra.mxu0 0.0
    %821 = vmatprep.subr.mxu0 0.0
    %822 = vmatpush1.msra.mxu0 0.0
    %823 = vmatprep.subr.mxu0 0.0
    %824 = vmatpush1.msra.mxu0 0.0
    %825 = vmatprep.subr.mxu0 0.0
    %826 = vmatpush1.msra.mxu0 0.0
    %827 = vmatprep.subr.mxu0 0.0
    %828 = vmatpush1.msra.mxu0 0.0
    %829 = vmatprep.subr.mxu0 0.0
    %830 = vmatpush1.msra.mxu0 0.0
    %831 = vmatprep.subr.mxu0 0.0
    %832 = vmatpush1.msra.mxu0 0.0
    %833 = vmatprep.subr.mxu0 0.0
    %834 = vmatpush1.msra.mxu0 0.0
    %835 = vmatprep.subr.mxu0 0.0
    %836 = vmatpush1.msra.mxu0 0.0
    %837 = vmatprep.subr.mxu0 0.0
    %838 = vmatpush1.msra.mxu0 0.0
    %839 = vmatprep.subr.mxu0 0.0
    %840 = vmatpush1.msra.mxu0 0.0
    %841 = vmatprep.subr.mxu0 0.0
    %842 = vmatpush1.msra.mxu0 0.0
    %843 = vmatprep.subr.mxu0 0.0
    %844 = vmatpush1.msra.mxu0 0.0
    %845 = vmatprep.subr.mxu0 0.0
    %846 = vmatpush1.msra.mxu0 0.0
    %847 = vmatprep.subr.mxu0 0.0
    %848 = vmatpush1.msra.mxu0 0.0
    %849 = vmatprep.subr.mxu0 0.0
    %850 = vmatpush1.msra.mxu0 0.0
    %851 = vmatprep.subr.mxu0 0.0
    %852 = vmatpush1.msra.mxu0 0.0
    %853 = vmatprep.subr.mxu0 0.0
    %854 = vmatpush1.msra.mxu0 0.0
    %855 = vmatprep.subr.mxu0 0.0
    %856 = vmatpush1.msra.mxu0 0.0
    %857 = vmatprep.subr.mxu0 0.0
    %858 = vmatpush1.msra.mxu0 0.0
    %859 = vmatprep.subr.mxu0 0.0
    %860 = vmatpush1.msra.mxu0 0.0
    %861 = vmatprep.subr.mxu0 0.0
    %862 = vmatpush1.msra.mxu0 0.0
    %863 = vmatprep.subr.mxu0 0.0
    %864 = vmatpush1.msra.mxu0 0.0
    %865 = vmatprep.mubr.f32.mxu0 0.0
    %866 = vmatmul.mubr.f32.gmra.mrb[0].mxu0 %v799
    %v867 = vpop.f32.mrb[0].mxu0
    %v868 = vadd.f32 0.0, %v867
    %v869 = vpop.f32.mrb[0].mxu0
    %v870 = vadd.f32 0.0, %v869
    %871 = vdwg.mxu0
    %v874 = vrot.slane %v868, 6
    %v875 = vrot.slane %v870, 6
    %v878 = vadd.f32 %v176, %v874
    %v879 = vadd.f32 %v178, %v875
    %v880 = vxor.u32 %v878, 2147483648
    %v881 = vxor.u32 %v879, 2147483648
    %v882 = vmul.f32 %v880, 1.442695
    %v883 = vpow.pop %v882
    %v884 = vmul.f32 %v881, 1.442695
    %v885 = vpow.pop %v884
    %v886 = vadd.f32 %v883, 1.0
    %v887 = vadd.f32 %v885, 1.0
    %v888 = vrcp.pop %v886
    %v889 = vmul.f32 1.0, %v888
    %v890 = vrcp.pop %v887
    %v891 = vmul.f32 1.0, %v890
    %v892 = vtanh.pop %v879
    %v894 = vrot.slane %v784, 6
    %v896 = vmul.f32 %v889, %v894
    %898 = vrot.lane.b32.xlu0 %v892, 64
    %v899 = vpop.permute.xlu0 %898
    %v901 = vmul.f32 %v889, %v899
    %903 = vrot.lane.b32.xlu0 %v901, 64
    %v904 = vpop.permute.xlu0 %903
    %v906 = vadd.f32 %v896, %v904
    %v907 = vtanh.pop %v906
    %909 = vrot.lane.b32.xlu0 %v907, 64
    %v910 = vpop.permute.xlu0 %909
    %v912 = vmul.f32 %v891, %v910
    %s913 = scalar_lea.vmem [#allocation5], 10
    %914 = vst.msk [vmem:[%s913 - $0x2] sm:$0xc] %vm426, %v912
    %916 = vrot.lane.b32.xlu0 %v912, 96
    %v917 = vpop.permute.xlu0 %916
    %s919 = scalar_lea.vmem [#allocation5], 26
    %920 = vst.msk [vmem:[%s919 - $0x2] sm:$0xc] %vm426, %v917
    %v921 = vrot.slane %v912, 2
    %v922 = vsel %vm196, %v921, 0
    %924 = vmatprep.subr.mxu0 %v181
    %925 = vmatpush1.msra.mxu0 %v180
    %926 = vmatprep.subr.mxu0 %v183
    %927 = vmatpush1.msra.mxu0 %v182
    %928 = vmatprep.subr.mxu0 %v185
    %929 = vmatpush1.msra.mxu0 %v184
    %930 = vmatprep.subr.mxu0 %v187
    %931 = vmatpush1.msra.mxu0 %v186
    %932 = vmatprep.subr.mxu0 %v189
    %933 = vmatpush1.msra.mxu0 %v188
    %934 = vmatprep.subr.mxu0 %v191
    %935 = vmatpush1.msra.mxu0 %v190
    %936 = vmatprep.subr.mxu0 %v193
    %937 = vmatpush1.msra.mxu0 %v192
    %938 = vmatprep.subr.mxu0 %v195
    %939 = vmatpush1.msra.mxu0 %v194
    %940 = vmatprep.subr.mxu0 0.0
    %941 = vmatpush1.msra.mxu0 0.0
    %942 = vmatprep.subr.mxu0 0.0
    %943 = vmatpush1.msra.mxu0 0.0
    %944 = vmatprep.subr.mxu0 0.0
    %945 = vmatpush1.msra.mxu0 0.0
    %946 = vmatprep.subr.mxu0 0.0
    %947 = vmatpush1.msra.mxu0 0.0
    %948 = vmatprep.subr.mxu0 0.0
    %949 = vmatpush1.msra.mxu0 0.0
    %950 = vmatprep.subr.mxu0 0.0
    %951 = vmatpush1.msra.mxu0 0.0
    %952 = vmatprep.subr.mxu0 0.0
    %953 = vmatpush1.msra.mxu0 0.0
    %954 = vmatprep.subr.mxu0 0.0
    %955 = vmatpush1.msra.mxu0 0.0
    %956 = vmatprep.subr.mxu0 0.0
    %957 = vmatpush1.msra.mxu0 0.0
    %958 = vmatprep.subr.mxu0 0.0
    %959 = vmatpush1.msra.mxu0 0.0
    %960 = vmatprep.subr.mxu0 0.0
    %961 = vmatpush1.msra.mxu0 0.0
    %962 = vmatprep.subr.mxu0 0.0
    %963 = vmatpush1.msra.mxu0 0.0
    %964 = vmatprep.subr.mxu0 0.0
    %965 = vmatpush1.msra.mxu0 0.0
    %966 = vmatprep.subr.mxu0 0.0
    %967 = vmatpush1.msra.mxu0 0.0
    %968 = vmatprep.subr.mxu0 0.0
    %969 = vmatpush1.msra.mxu0 0.0
    %970 = vmatprep.subr.mxu0 0.0
    %971 = vmatpush1.msra.mxu0 0.0
    %972 = vmatprep.subr.mxu0 0.0
    %973 = vmatpush1.msra.mxu0 0.0
    %974 = vmatprep.subr.mxu0 0.0
    %975 = vmatpush1.msra.mxu0 0.0
    %976 = vmatprep.subr.mxu0 0.0
    %977 = vmatpush1.msra.mxu0 0.0
    %978 = vmatprep.subr.mxu0 0.0
    %979 = vmatpush1.msra.mxu0 0.0
    %980 = vmatprep.subr.mxu0 0.0
    %981 = vmatpush1.msra.mxu0 0.0
    %982 = vmatprep.subr.mxu0 0.0
    %983 = vmatpush1.msra.mxu0 0.0
    %984 = vmatprep.subr.mxu0 0.0
    %985 = vmatpush1.msra.mxu0 0.0
    %986 = vmatprep.subr.mxu0 0.0
    %987 = vmatpush1.msra.mxu0 0.0
    %988 = vmatprep.mubr.f32.mxu0 0.0
    %989 = vmatmul.mubr.f32.gmra.mrb[0].mxu0 %v922
    %v990 = vpop.f32.mrb[0].mxu0
    %v991 = vadd.f32 0.0, %v990
    %v992 = vpop.f32.mrb[0].mxu0
    %v993 = vadd.f32 0.0, %v992
    %994 = vdwg.mxu0
    %v997 = vrot.slane %v991, 4
    %v998 = vrot.slane %v993, 4
    %v1001 = vadd.f32 %v176, %v997
    %v1002 = vadd.f32 %v178, %v998
    %v1003 = vxor.u32 %v1001, 2147483648
    %v1004 = vxor.u32 %v1002, 2147483648
    %v1005 = vmul.f32 %v1003, 1.442695
    %v1006 = vpow.pop %v1005
    %v1007 = vmul.f32 %v1004, 1.442695
    %v1008 = vpow.pop %v1007
    %v1009 = vadd.f32 %v1006, 1.0
    %v1010 = vadd.f32 %v1008, 1.0
    %v1011 = vrcp.pop %v1009
    %v1012 = vmul.f32 1.0, %v1011
    %v1013 = vrcp.pop %v1010
    %v1014 = vmul.f32 1.0, %v1013
    %v1015 = vtanh.pop %v1002
    %v1017 = vrot.slane %v906, 6
    %v1019 = vmul.f32 %v1012, %v1017
    %1021 = vrot.lane.b32.xlu0 %v1015, 64
    %v1022 = vpop.permute.xlu0 %1021
    %v1024 = vmul.f32 %v1012, %v1022
    %1026 = vrot.lane.b32.xlu0 %v1024, 64
    %v1027 = vpop.permute.xlu0 %1026
    %v1029 = vadd.f32 %v1019, %v1027
    %v1030 = vtanh.pop %v1029
    %1032 = vrot.lane.b32.xlu0 %v1030, 64
    %v1033 = vpop.permute.xlu0 %1032
    %v1035 = vmul.f32 %v1014, %v1033
    %s1036 = scalar_lea.vmem [#allocation5], 12
    %1037 = vst.msk [vmem:[%s1036 - $0x4] sm:$0x30] %vm550, %v1035
    %1039 = vrot.lane.b32.xlu0 %v1035, 96
    %v1040 = vpop.permute.xlu0 %1039
    %s1042 = scalar_lea.vmem [#allocation5], 28
    %1043 = vst.msk [vmem:[%s1042 - $0x4] sm:$0x30] %vm550, %v1040
    %v1044 = vrot.slane %v1035, 4
    %v1045 = vsel %vm196, %v1044, 0
    %1047 = vmatprep.subr.mxu0 %v181
    %1048 = vmatpush1.msra.mxu0 %v180
    %1049 = vmatprep.subr.mxu0 %v183
    %1050 = vmatpush1.msra.mxu0 %v182
    %1051 = vmatprep.subr.mxu0 %v185
    %1052 = vmatpush1.msra.mxu0 %v184
    %1053 = vmatprep.subr.mxu0 %v187
    %1054 = vmatpush1.msra.mxu0 %v186
    %1055 = vmatprep.subr.mxu0 %v189
    %1056 = vmatpush1.msra.mxu0 %v188
    %1057 = vmatprep.subr.mxu0 %v191
    %1058 = vmatpush1.msra.mxu0 %v190
    %1059 = vmatprep.subr.mxu0 %v193
    %1060 = vmatpush1.msra.mxu0 %v192
    %1061 = vmatprep.subr.mxu0 %v195
    %1062 = vmatpush1.msra.mxu0 %v194
    %1063 = vmatprep.subr.mxu0 0.0
    %1064 = vmatpush1.msra.mxu0 0.0
    %1065 = vmatprep.subr.mxu0 0.0
    %1066 = vmatpush1.msra.mxu0 0.0
    %1067 = vmatprep.subr.mxu0 0.0
    %1068 = vmatpush1.msra.mxu0 0.0
    %1069 = vmatprep.subr.mxu0 0.0
    %1070 = vmatpush1.msra.mxu0 0.0
    %1071 = vmatprep.subr.mxu0 0.0
    %1072 = vmatpush1.msra.mxu0 0.0
    %1073 = vmatprep.subr.mxu0 0.0
    %1074 = vmatpush1.msra.mxu0 0.0
    %1075 = vmatprep.subr.mxu0 0.0
    %1076 = vmatpush1.msra.mxu0 0.0
    %1077 = vmatprep.subr.mxu0 0.0
    %1078 = vmatpush1.msra.mxu0 0.0
    %1079 = vmatprep.subr.mxu0 0.0
    %1080 = vmatpush1.msra.mxu0 0.0
    %1081 = vmatprep.subr.mxu0 0.0
    %1082 = vmatpush1.msra.mxu0 0.0
    %1083 = vmatprep.subr.mxu0 0.0
    %1084 = vmatpush1.msra.mxu0 0.0
    %1085 = vmatprep.subr.mxu0 0.0
    %1086 = vmatpush1.msra.mxu0 0.0
    %1087 = vmatprep.subr.mxu0 0.0
    %1088 = vmatpush1.msra.mxu0 0.0
    %1089 = vmatprep.subr.mxu0 0.0
    %1090 = vmatpush1.msra.mxu0 0.0
    %1091 = vmatprep.subr.mxu0 0.0
    %1092 = vmatpush1.msra.mxu0 0.0
    %1093 = vmatprep.subr.mxu0 0.0
    %1094 = vmatpush1.msra.mxu0 0.0
    %1095 = vmatprep.subr.mxu0 0.0
    %1096 = vmatpush1.msra.mxu0 0.0
    %1097 = vmatprep.subr.mxu0 0.0
    %1098 = vmatpush1.msra.mxu0 0.0
    %1099 = vmatprep.subr.mxu0 0.0
    %1100 = vmatpush1.msra.mxu0 0.0
    %1101 = vmatprep.subr.mxu0 0.0
    %1102 = vmatpush1.msra.mxu0 0.0
    %1103 = vmatprep.subr.mxu0 0.0
    %1104 = vmatpush1.msra.mxu0 0.0
    %1105 = vmatprep.subr.mxu0 0.0
    %1106 = vmatpush1.msra.mxu0 0.0
    %1107 = vmatprep.subr.mxu0 0.0
    %1108 = vmatpush1.msra.mxu0 0.0
    %1109 = vmatprep.subr.mxu0 0.0
    %1110 = vmatpush1.msra.mxu0 0.0
    %1111 = vmatprep.mubr.f32.mxu0 0.0
    %1112 = vmatmul.mubr.f32.gmra.mrb[0].mxu0 %v1045
    %v1113 = vpop.f32.mrb[0].mxu0
    %v1114 = vadd.f32 0.0, %v1113
    %v1115 = vpop.f32.mrb[0].mxu0
    %v1116 = vadd.f32 0.0, %v1115
    %1117 = vdwg.mxu0
    %v1120 = vrot.slane %v1114, 2
    %v1121 = vrot.slane %v1116, 2
    %v1124 = vadd.f32 %v176, %v1120
    %v1125 = vadd.f32 %v178, %v1121
    %v1126 = vxor.u32 %v1124, 2147483648
    %v1127 = vxor.u32 %v1125, 2147483648
    %v1128 = vmul.f32 %v1126, 1.442695
    %v1129 = vpow.pop %v1128
    %v1130 = vmul.f32 %v1127, 1.442695
    %v1131 = vpow.pop %v1130
    %v1132 = vadd.f32 %v1129, 1.0
    %v1133 = vadd.f32 %v1131, 1.0
    %v1134 = vrcp.pop %v1132
    %v1135 = vmul.f32 1.0, %v1134
    %v1136 = vrcp.pop %v1133
    %v1137 = vmul.f32 1.0, %v1136
    %v1138 = vtanh.pop %v1125
    %v1140 = vrot.slane %v1029, 6
    %v1142 = vmul.f32 %v1135, %v1140
    %1144 = vrot.lane.b32.xlu0 %v1138, 64
    %v1145 = vpop.permute.xlu0 %1144
    %v1147 = vmul.f32 %v1135, %v1145
    %1149 = vrot.lane.b32.xlu0 %v1147, 64
    %v1150 = vpop.permute.xlu0 %1149
    %v1152 = vadd.f32 %v1142, %v1150
    %v1153 = vtanh.pop %v1152
    %1155 = vrot.lane.b32.xlu0 %v1153, 64
    %v1156 = vpop.permute.xlu0 %1155
    %v1158 = vmul.f32 %v1137, %v1156
    %s1159 = scalar_lea.vmem [#allocation5], 14
    %1160 = vst.msk [vmem:[%s1159 - $0x6] sm:$0xc0] %vm674, %v1158
    %1162 = vrot.lane.b32.xlu0 %v1158, 96
    %v1163 = vpop.permute.xlu0 %1162
    %s1165 = scalar_lea.vmem [#allocation5], 30
    %1166 = vst.msk [vmem:[%s1165 - $0x6] sm:$0xc0] %vm674, %v1163
    %v1167 = vld [vmem:[%s5] sm:$0xff]
    %v1168 = vld [vmem:[%s5 + $0x8] sm:$0xff]
    %v1169 = vld [vmem:[%s5 + $0x10] sm:$0xff]
    %v1170 = vld [vmem:[%s5 + $0x18] sm:$0xff]
    %v1171 = vld [vmem:[%s5 + $0x20] sm:$0xff]
    %v1172 = vld [vmem:[%s5 + $0x28] sm:$0xff]
    %v1173 = vld [vmem:[%s5 + $0x30] sm:$0xff]
    %v1174 = vld [vmem:[%s5 + $0x38] sm:$0xff]
    %v1175 = vld [vmem:[%s6] sm:$0x1]
    %v1177 = vlaneseq
    %v1178 = vshrl.u32 %v1177, 7
    %v1179 = vsub.s32 0, %v1178
    %v1180 = vrot.slane %v1175, %v1179
    %v1182 = vrot.slane %v1158, 6
    %v1183 = vsel %vm196, %v1182, 0
    %1185 = vmatprep.subr.mxu0 0.0
    %1186 = vmatpush1.msra.mxu0 %v1167
    %1187 = vmatprep.subr.mxu0 0.0
    %1188 = vmatpush1.msra.mxu0 %v1168
    %1189 = vmatprep.subr.mxu0 0.0
    %1190 = vmatpush1.msra.mxu0 %v1169
    %1191 = vmatprep.subr.mxu0 0.0
    %1192 = vmatpush1.msra.mxu0 %v1170
    %1193 = vmatprep.subr.mxu0 0.0
    %1194 = vmatpush1.msra.mxu0 %v1171
    %1195 = vmatprep.subr.mxu0 0.0
    %1196 = vmatpush1.msra.mxu0 %v1172
    %1197 = vmatprep.subr.mxu0 0.0
    %1198 = vmatpush1.msra.mxu0 %v1173
    %1199 = vmatprep.subr.mxu0 0.0
    %1200 = vmatpush1.msra.mxu0 %v1174
    %1201 = vmatprep.subr.mxu0 0.0
    %1202 = vmatpush1.msra.mxu0 0.0
    %1203 = vmatprep.subr.mxu0 0.0
    %1204 = vmatpush1.msra.mxu0 0.0
    %1205 = vmatprep.subr.mxu0 0.0
    %1206 = vmatpush1.msra.mxu0 0.0
    %1207 = vmatprep.subr.mxu0 0.0
    %1208 = vmatpush1.msra.mxu0 0.0
    %1209 = vmatprep.subr.mxu0 0.0
    %1210 = vmatpush1.msra.mxu0 0.0
    %1211 = vmatprep.subr.mxu0 0.0
    %1212 = vmatpush1.msra.mxu0 0.0
    %1213 = vmatprep.subr.mxu0 0.0
    %1214 = vmatpush1.msra.mxu0 0.0
    %1215 = vmatprep.subr.mxu0 0.0
    %1216 = vmatpush1.msra.mxu0 0.0
    %1217 = vmatprep.subr.mxu0 0.0
    %1218 = vmatpush1.msra.mxu0 0.0
    %1219 = vmatprep.subr.mxu0 0.0
    %1220 = vmatpush1.msra.mxu0 0.0
    %1221 = vmatprep.subr.mxu0 0.0
    %1222 = vmatpush1.msra.mxu0 0.0
    %1223 = vmatprep.subr.mxu0 0.0
    %1224 = vmatpush1.msra.mxu0 0.0
    %1225 = vmatprep.subr.mxu0 0.0
    %1226 = vmatpush1.msra.mxu0 0.0
    %1227 = vmatprep.subr.mxu0 0.0
    %1228 = vmatpush1.msra.mxu0 0.0
    %1229 = vmatprep.subr.mxu0 0.0
    %1230 = vmatpush1.msra.mxu0 0.0
    %1231 = vmatprep.subr.mxu0 0.0
    %1232 = vmatpush1.msra.mxu0 0.0
    %1233 = vmatprep.subr.mxu0 0.0
    %1234 = vmatpush1.msra.mxu0 0.0
    %1235 = vmatprep.subr.mxu0 0.0
    %1236 = vmatpush1.msra.mxu0 0.0
    %1237 = vmatprep.subr.mxu0 0.0
    %1238 = vmatpush1.msra.mxu0 0.0
    %1239 = vmatprep.subr.mxu0 0.0
    %1240 = vmatpush1.msra.mxu0 0.0
    %1241 = vmatprep.subr.mxu0 0.0
    %1242 = vmatpush1.msra.mxu0 0.0
    %1243 = vmatprep.subr.mxu0 0.0
    %1244 = vmatpush1.msra.mxu0 0.0
    %1245 = vmatprep.subr.mxu0 0.0
    %1246 = vmatpush1.msra.mxu0 0.0
    %1247 = vmatprep.subr.mxu0 0.0
    %1248 = vmatpush1.msra.mxu0 0.0
    %1249 = vmatprep.mubr.f32.mxu0 0.0
    %1250 = vmatmul.mubr.f32.gmra.mrb[0].mxu0 %v1183
    %v1251 = vpop.f32.mrb[0].mxu0
    %v1252 = vadd.f32 %v1180, %v1251
    %v1253 = vpop.f32.mrb[0].mxu0
    %1254 = vdwg.mxu0
    %v1255 = vtanh.pop %v1252
    %1256 = vst.msk [vmem:[#allocation6] sm:$0x3] %vm303, %v1255
    %v1258 = vrot.slane %v1152, 6
    %1259 = vrot.lane.b32.xlu0 %v1258, 64
    %v1260 = vpop.permute.xlu0 %1259
    %v1261 = vsel %vm196, %v1260, 0
    %1263 = vmatprep.subr.mxu0 0.0
    %1264 = vmatpush1.msra.mxu0 %v1167
    %1265 = vmatprep.subr.mxu0 0.0
    %1266 = vmatpush1.msra.mxu0 %v1168
    %1267 = vmatprep.subr.mxu0 0.0
    %1268 = vmatpush1.msra.mxu0 %v1169
    %1269 = vmatprep.subr.mxu0 0.0
    %1270 = vmatpush1.msra.mxu0 %v1170
    %1271 = vmatprep.subr.mxu0 0.0
    %1272 = vmatpush1.msra.mxu0 %v1171
    %1273 = vmatprep.subr.mxu0 0.0
    %1274 = vmatpush1.msra.mxu0 %v1172
    %1275 = vmatprep.subr.mxu0 0.0
    %1276 = vmatpush1.msra.mxu0 %v1173
    %1277 = vmatprep.subr.mxu0 0.0
    %1278 = vmatpush1.msra.mxu0 %v1174
    %1279 = vmatprep.subr.mxu0 0.0
    %1280 = vmatpush1.msra.mxu0 0.0
    %1281 = vmatprep.subr.mxu0 0.0
    %1282 = vmatpush1.msra.mxu0 0.0
    %1283 = vmatprep.subr.mxu0 0.0
    %1284 = vmatpush1.msra.mxu0 0.0
    %1285 = vmatprep.subr.mxu0 0.0
    %1286 = vmatpush1.msra.mxu0 0.0
    %1287 = vmatprep.subr.mxu0 0.0
    %1288 = vmatpush1.msra.mxu0 0.0
    %1289 = vmatprep.subr.mxu0 0.0
    %1290 = vmatpush1.msra.mxu0 0.0
    %1291 = vmatprep.subr.mxu0 0.0
    %1292 = vmatpush1.msra.mxu0 0.0
    %1293 = vmatprep.subr.mxu0 0.0
    %1294 = vmatpush1.msra.mxu0 0.0
    %1295 = vmatprep.subr.mxu0 0.0
    %1296 = vmatpush1.msra.mxu0 0.0
    %1297 = vmatprep.subr.mxu0 0.0
    %1298 = vmatpush1.msra.mxu0 0.0
    %1299 = vmatprep.subr.mxu0 0.0
    %1300 = vmatpush1.msra.mxu0 0.0
    %1301 = vmatprep.subr.mxu0 0.0
    %1302 = vmatpush1.msra.mxu0 0.0
    %1303 = vmatprep.subr.mxu0 0.0
    %1304 = vmatpush1.msra.mxu0 0.0
    %1305 = vmatprep.subr.mxu0 0.0
    %1306 = vmatpush1.msra.mxu0 0.0
    %1307 = vmatprep.subr.mxu0 0.0
    %1308 = vmatpush1.msra.mxu0 0.0
    %1309 = vmatprep.subr.mxu0 0.0
    %1310 = vmatpush1.msra.mxu0 0.0
    %1311 = vmatprep.subr.mxu0 0.0
    %1312 = vmatpush1.msra.mxu0 0.0
    %1313 = vmatprep.subr.mxu0 0.0
    %1314 = vmatpush1.msra.mxu0 0.0
    %1315 = vmatprep.subr.mxu0 0.0
    %1316 = vmatpush1.msra.mxu0 0.0
    %1317 = vmatprep.subr.mxu0 0.0
    %1318 = vmatpush1.msra.mxu0 0.0
    %1319 = vmatprep.subr.mxu0 0.0
    %1320 = vmatpush1.msra.mxu0 0.0
    %1321 = vmatprep.subr.mxu0 0.0
    %1322 = vmatpush1.msra.mxu0 0.0
    %1323 = vmatprep.subr.mxu0 0.0
    %1324 = vmatpush1.msra.mxu0 0.0
    %1325 = vmatprep.subr.mxu0 0.0
    %1326 = vmatpush1.msra.mxu0 0.0
    %1327 = vmatprep.mubr.f32.mxu0 0.0
    %1328 = vmatmul.mubr.f32.gmra.mrb[0].mxu0 %v1261
    %v1329 = vpop.f32.mrb[0].mxu0
    %v1330 = vadd.f32 %v1180, %v1329
    %v1331 = vpop.f32.mrb[0].mxu0
    %1332 = vdwg.mxu0
    %v1333 = vtanh.pop %v1330
    %1334 = vst.msk [vmem:[#allocation8] sm:$0x3] %vm303, %v1333
    // Predicated region
    $region34: #{encoder_forward.1} parent=1 // pred_check
      _
    $region35: #{encoder_forward.1} parent=1 // pred_check_branch
      %1336 = sbr.rel (0) target = $region37
    $region36: #{encoder_forward.1} parent=1 // pred_region
      %s1338 = ssub.s32 512, 512
      %1339 = vsyncadd [#allocation4], %s1338
      %s1340 = sshll.u32 [#allocation5], 4
      %s1341 = int_to_ptr.vmem [resolvable:$true] %s1340
      %1346 = dma.vmem_to_hbm [thread:$0]  %s1341, 512, %s7, [#allocation4], 32, 32, 2
    $region37: #{encoder_forward.1} parent=1 // pred_fallthru
      _
    // Predicated region
    $region38: #{encoder_forward.1} parent=1 // pred_check
      _
    $region39: #{encoder_forward.1} parent=1 // pred_check_branch
      %1348 = sbr.rel (0) target = $region41
    $region40: #{encoder_forward.1} parent=1 // pred_region
      %s1350 = ssub.s32 32, 32
      %1351 = vsyncadd [#allocation7], %s1350
      %s1353 = sshll.u32 [#allocation6], 4
      %s1354 = int_to_ptr.vmem [resolvable:$true] %s1353
      %1356 = dma.vmem_to_hbm [thread:$0]  %s1354, 32, %s8, [#allocation7]
    $region41: #{encoder_forward.1} parent=1 // pred_fallthru
      _
    // Predicated region
    $region42: #{encoder_forward.1} parent=1 // pred_check
      _
    $region43: #{encoder_forward.1} parent=1 // pred_check_branch
      %1358 = sbr.rel (0) target = $region45
    $region44: #{encoder_forward.1} parent=1 // pred_region
      %s1360 = ssub.s32 32, 32
      %1361 = vsyncadd [#allocation7], %s1360
      %s1363 = sshll.u32 [#allocation8], 4
      %s1364 = int_to_ptr.vmem [resolvable:$true] %s1363
      %1366 = dma.vmem_to_hbm [thread:$0]  %s1364, 32, %s9, [#allocation7]
    $region45: #{encoder_forward.1} parent=1 // pred_fallthru
      _
    // Predicated region
    $region46: #{encoder_forward.1} parent=1 // pred_check
      _
    $region47: #{encoder_forward.1} parent=1 // pred_check_branch
      %1368 = sbr.rel (0) target = $region49
    $region48: #{encoder_forward.1} parent=1 // pred_region
      %1369 = dma.done [#allocation4], 512
    $region49: #{encoder_forward.1} parent=1 // pred_fallthru
      _
    // Predicated region
    $region50: #{encoder_forward.1} parent=1 // pred_check
      _
    $region51: #{encoder_forward.1} parent=1 // pred_check_branch
      %1371 = sbr.rel (0) target = $region53
    $region52: #{encoder_forward.1} parent=1 // pred_region
      %1372 = dma.done [#allocation7], 32
    $region53: #{encoder_forward.1} parent=1 // pred_fallthru
      _
    // Predicated region
    $region54: #{encoder_forward.1} parent=1 // pred_check
      _
    $region55: #{encoder_forward.1} parent=1 // pred_check_branch
      %1374 = sbr.rel (0) target = $region57
    $region56: #{encoder_forward.1} parent=1 // pred_region
      %1375 = dma.done [#allocation7], 32
    $region57: #{encoder_forward.1} parent=1 // pred_fallthru
      _
    %1376 = vsyncpa [#allocation3], 1
    %1377 = vsyncpa [#allocation4], 1
    %1378 = vsyncpa [#allocation7], 1

</llo_original>
